<compile_context>
chip_gen: v7x
topology: tpu7x:2x2x1
jax: 0.10.0
libtpu: 0.0.40
codegen_flags: <defaults>
</compile_context>

<pallas_src>
import jax
import jax.numpy as jnp
import numpy as np
from jax.experimental import pallas as pl
from jax.experimental.pallas import tpu as pltpu


def _gru_topology_kernel(x_idx_ref, topo_ref, wrzx_ref, brz_ref, wh2x_ref,
                         bh_ref, wrzh_ref, wh1_ref, out_ref, x_scr):
    """Single-invocation GRU_Topology forward.

    Shapes (all static):
      x_idx_ref : SMEM (B,)   int32   topology index per batch row
      topo_ref  : VMEM (N, T, D)      all stored topologies
      wrzx_ref  : VMEM (D, 2M)        [Wr1_x^T | Wz_x^T]
      brz_ref   : VMEM (1, 2M)        [br1 | bz]
      wh2x_ref  : VMEM (D, M)         Wh2^T
      bh_ref    : VMEM (1, M)         bh
      wrzh_ref  : VMEM (M, 2M)        [Wr1_h^T | Wz_h^T]
      wh1_ref   : VMEM (M, M)         Wh1^T
      out_ref   : VMEM (B, T*M)       h_t for all t, lane-concatenated
      x_scr     : VMEM (B, T, D)      gathered topologies (scratch)
    """
    B, T, D = x_scr.shape
    M = wh1_ref.shape[0]

    # ---- In-kernel gather: X[b] = topo[x_idx[b]] (dynamic leading index). ----
    for b in range(B):
        x_scr[b] = topo_ref[x_idx_ref[b]]

    wrzx = wrzx_ref[...]                                            # (D, 2M)
    brz = brz_ref[...]                                              # (1, 2M)
    wh2x = wh2x_ref[...]                                            # (D, M)
    bh = bh_ref[...]                                                # (1, M)

    # ---- Phase 1 (non-recurrent): per-step x-projections + biases. --------
    # Two lane-aligned matmuls per step (no lane-offset slicing needed);
    # independent of h, so entirely off the serial recurrence chain.
    xrz = []   # T x (B, 2M): [r | z] x-contributions (+ biases)
    xh = []    # T x (B, M) : candidate x-contribution (+ bias)
    for t in range(T):
        xt = x_scr[:, t, :]                                         # (B, D)
        xrz.append(jnp.dot(xt, wrzx, preferred_element_type=jnp.float32) + brz)
        xh.append(jnp.dot(xt, wh2x, preferred_element_type=jnp.float32) + bh)

    wrzh = wrzh_ref[...]                                            # (M, 2M)
    wh1 = wh1_ref[...]                                              # (M, M)

    # ---- Phase 2 (recurrent): fully unrolled, h lives in vregs. -----------
    # t == 0 peeled:  h0 = tanh(Wh2 @ x0 + bh)
    h = jnp.tanh(xh[0])                                             # (B, M)
    hs = [h]
    for t in range(1, T):
        # Fused r/z gate: one matmul + one EUP tanh on the serial chain.
        # sigmoid(x) == 0.5*tanh(0.5*x) + 0.5; r occupies lanes 0..M-1 so the
        # slice feeding the candidate matmul needs no lane shift.
        rz = 0.5 * jnp.tanh(
            0.5 * (jnp.dot(h, wrzh, preferred_element_type=jnp.float32)
                   + xrz[t])) + 0.5                                 # (B, 2M)
        r = rz[:, :M]
        z = rz[:, M:]
        h_tilde = jnp.tanh(
            jnp.dot(r * h, wh1, preferred_element_type=jnp.float32) + xh[t])
        h = h + z * (h_tilde - h)                                   # == (1-z)h + z*h~
        hs.append(h)

    # One bulk lane-dense store of the whole (B, T*M) output slab.
    out_ref[...] = jnp.concatenate(hs, axis=1)


def fuse_gru_params(params):
    """One-time fusion/transposition of the GRU parameters (outside the jit)."""
    Wz, Wr1, Wh1, Wh2, bz, br1, bh = [jnp.asarray(p, jnp.float32) for p in params]
    M = Wh1.shape[0]
    wrzx = jnp.concatenate([Wr1[:, M:].T, Wz[:, M:].T], axis=1)     # (D, 2M)
    brz = jnp.concatenate([br1, bz]).reshape(1, 2 * M)              # (1, 2M)
    wh2x = Wh2.T                                                    # (D, M)
    bhv = bh.reshape(1, M)                                          # (1, M)
    wrzh = jnp.concatenate([Wr1[:, :M].T, Wz[:, :M].T], axis=1)     # (M, 2M)
    wh1 = Wh1.T                                                     # (M, M)
    return wrzx, brz, wh2x, bhv, wrzh, wh1


@jax.jit
def gru_topology_forward(x_idx, topo, fused_params):
    """x_idx: (B,) int; topo: (N, T, D) f32; fused_params: fuse_gru_params(...).

    Returns (B, T, M) float32.
    """
    wrzx, brz, wh2x, bhv, wrzh, wh1 = fused_params
    _, T, D = topo.shape
    M = wh1.shape[0]
    B = x_idx.shape[0]

    smem = pl.BlockSpec(memory_space=pltpu.MemorySpace.SMEM)
    vmem = pl.BlockSpec(memory_space=pltpu.MemorySpace.VMEM)
    out = pl.pallas_call(
        _gru_topology_kernel,
        out_shape=jax.ShapeDtypeStruct((B, T * M), jnp.float32),
        in_specs=[smem, vmem, vmem, vmem, vmem, vmem, vmem, vmem],
        out_specs=vmem,
        scratch_shapes=[pltpu.VMEM((B, T, D), jnp.float32)],
    )(x_idx.astype(jnp.int32), jnp.asarray(topo, jnp.float32),
      wrzx, brz, wh2x, bhv, wrzh, wh1)

    # (B, T*M) -> (B, T, M): row-major compatible reshape, no transpose/copy.
    return out.reshape(B, T, M)


def gru_topology_ref(x_idx, topo, params, n_h_units):
    """Pure-JAX reference mirroring the PyTorch code (M, B) convention."""
    M = n_h_units
    Wz, Wr1, Wh1, Wh2, bz, br1, bh = [jnp.asarray(p, jnp.float32) for p in params]
    X = jnp.asarray(topo, jnp.float32)[x_idx.astype(jnp.int32)]  # (B, T, D)
    T = X.shape[1]
    h_list = []
    hp = None
    Wh = jnp.concatenate([Wh1, Wh2], axis=1)
    Wzr = jnp.concatenate([Wz, Wr1], axis=0)
    bzr = jnp.concatenate([bz, br1], axis=0)
    for i in range(T):
        xt = X[:, i, :].T                                        # (D, B)
        if i == 0:
            hp = jnp.tanh(Wh2 @ xt + bh[:, None])
        else:
            zr = jax.nn.sigmoid(
                Wzr @ jnp.concatenate([hp, xt], axis=0) + bzr[:, None])
            zt, rt1 = zr[:M, :], zr[M:2 * M, :]
            ht_tilde = jnp.tanh(
                Wh @ jnp.concatenate([rt1 * hp, xt], axis=0) + bh[:, None])
            hp = (1.0 - zt) * hp + zt * ht_tilde
        h_list.append(hp)
    h = jnp.stack(h_list, axis=1)                                # (M, T, B)
    return jnp.transpose(h, (2, 1, 0))                           # (B, T, M)


def make_params(key, M, D):
    """Deterministic synthetic init (trunc-normal-like, std=0.1)."""
    ks = jax.random.split(key, 7)
    tn = lambda k, shape, mean=0.0: (
        mean + 0.1 * jax.random.truncated_normal(k, -2.0, 2.0, shape, jnp.float32))
    Wz = tn(ks[0], (M, M + D))
    Wr1 = tn(ks[1], (M, M + D))
    Wh1 = tn(ks[2], (M, M))
    Wh2 = tn(ks[3], (M, D), mean=-0.1)
    bz = tn(ks[4], (M,))
    br1 = tn(ks[5], (M,))
    bh = tn(ks[6], (M,))
    return (Wz, Wr1, Wh1, Wh2, bz, br1, bh)


if __name__ == "__main__":
    M = 32          # n_h_units
    D = 8           # dim_redu (topo feature dim)
    T = 8           # sequence length
    B = 4           # batch
    N_TOPO = 6      # number of stored topologies

    key = jax.random.PRNGKey(0)
    k_par, k_topo, k_idx = jax.random.split(key, 3)

    params = make_params(k_par, M, D)
    topo = jax.random.normal(k_topo, (N_TOPO, T, D), jnp.float32)
    x_idx = jax.random.randint(k_idx, (B,), 0, N_TOPO, jnp.int32)

    # Fused weights are parameters: build them once, outside the per-call jit.
    fused = fuse_gru_params(params)

    out = gru_topology_forward(x_idx, topo, fused)
    out = jax.block_until_ready(out)

    ref = gru_topology_ref(x_idx, topo, params, M)
    np.testing.assert_allclose(np.asarray(out), np.asarray(ref),
                               rtol=5e-5, atol=5e-5)
    assert out.shape == (B, T, M)
    print("KERNEL_OK")
</pallas_src>

<mosaic_0001>
module attributes {stable_mosaic.version = 11 : i64} {
  func.func @_gru_topology_kernel(%arg0: memref<4xi32, #tpu.memory_space<smem>>, %arg1: memref<6x8x8xf32, #tpu.memory_space<vmem>>, %arg2: memref<8x64xf32, #tpu.memory_space<vmem>>, %arg3: memref<1x64xf32, #tpu.memory_space<vmem>>, %arg4: memref<8x32xf32, #tpu.memory_space<vmem>>, %arg5: memref<1x32xf32, #tpu.memory_space<vmem>>, %arg6: memref<32x64xf32, #tpu.memory_space<vmem>>, %arg7: memref<32x32xf32, #tpu.memory_space<vmem>>, %arg8: memref<4x256xf32, #tpu.memory_space<vmem>>, %arg9: memref<4x8x8xf32, #tpu.memory_space<vmem>>) attributes {dimension_semantics = [], scalar_prefetch = 0 : i64, scratch_operands = 1 : i64, tpu.core_type = #tpu.core_type<tc>} {
    %c0 = arith.constant 0 : index
    %0 = memref.load %arg0[%c0] : memref<4xi32, #tpu.memory_space<smem>>
    %1 = arith.index_cast %0 : i32 to index
    %c0_0 = arith.constant 0 : index
    %c0_1 = arith.constant 0 : index
    %2 = vector.load %arg1[%1, %c0_0, %c0_1] : memref<6x8x8xf32, #tpu.memory_space<vmem>>, vector<1x8x8xf32>
    %3 = vector.shape_cast %2 : vector<1x8x8xf32> to vector<8x8xf32>
    %c0_2 = arith.constant 0 : index
    %c0_3 = arith.constant 0 : index
    %c0_4 = arith.constant 0 : index
    %4 = vector.load %arg9[%c0_2, %c0_3, %c0_4] : memref<4x8x8xf32, #tpu.memory_space<vmem>>, vector<1x8x8xf32>
    %5 = vector.shape_cast %4 : vector<1x8x8xf32> to vector<8x8xf32>
    %6 = vector.shape_cast %3 : vector<8x8xf32> to vector<1x8x8xf32>
    tpu.vector_store %arg9[%c0_2, %c0_3, %c0_4], %6 {strides = array<i32>} : memref<4x8x8xf32, #tpu.memory_space<vmem>>, vector<1x8x8xf32>,
    %c1 = arith.constant 1 : index
    %7 = memref.load %arg0[%c1] : memref<4xi32, #tpu.memory_space<smem>>
    %8 = arith.index_cast %7 : i32 to index
    %c0_5 = arith.constant 0 : index
    %c0_6 = arith.constant 0 : index
    %9 = vector.load %arg1[%8, %c0_5, %c0_6] : memref<6x8x8xf32, #tpu.memory_space<vmem>>, vector<1x8x8xf32>
    %10 = vector.shape_cast %9 : vector<1x8x8xf32> to vector<8x8xf32>
    %c1_7 = arith.constant 1 : index
    %c0_8 = arith.constant 0 : index
    %c0_9 = arith.constant 0 : index
    %11 = vector.load %arg9[%c1_7, %c0_8, %c0_9] : memref<4x8x8xf32, #tpu.memory_space<vmem>>, vector<1x8x8xf32>
    %12 = vector.shape_cast %11 : vector<1x8x8xf32> to vector<8x8xf32>
    %13 = vector.shape_cast %10 : vector<8x8xf32> to vector<1x8x8xf32>
    tpu.vector_store %arg9[%c1_7, %c0_8, %c0_9], %13 {strides = array<i32>} : memref<4x8x8xf32, #tpu.memory_space<vmem>>, vector<1x8x8xf32>,
    %c2 = arith.constant 2 : index
    %14 = memref.load %arg0[%c2] : memref<4xi32, #tpu.memory_space<smem>>
    %15 = arith.index_cast %14 : i32 to index
    %c0_10 = arith.constant 0 : index
    %c0_11 = arith.constant 0 : index
    %16 = vector.load %arg1[%15, %c0_10, %c0_11] : memref<6x8x8xf32, #tpu.memory_space<vmem>>, vector<1x8x8xf32>
    %17 = vector.shape_cast %16 : vector<1x8x8xf32> to vector<8x8xf32>
    %c2_12 = arith.constant 2 : index
    %c0_13 = arith.constant 0 : index
    %c0_14 = arith.constant 0 : index
    %18 = vector.load %arg9[%c2_12, %c0_13, %c0_14] : memref<4x8x8xf32, #tpu.memory_space<vmem>>, vector<1x8x8xf32>
    %19 = vector.shape_cast %18 : vector<1x8x8xf32> to vector<8x8xf32>
    %20 = vector.shape_cast %17 : vector<8x8xf32> to vector<1x8x8xf32>
    tpu.vector_store %arg9[%c2_12, %c0_13, %c0_14], %20 {strides = array<i32>} : memref<4x8x8xf32, #tpu.memory_space<vmem>>, vector<1x8x8xf32>,
    %c3 = arith.constant 3 : index
    %21 = memref.load %arg0[%c3] : memref<4xi32, #tpu.memory_space<smem>>
    %22 = arith.index_cast %21 : i32 to index
    %c0_15 = arith.constant 0 : index
    %c0_16 = arith.constant 0 : index
    %23 = vector.load %arg1[%22, %c0_15, %c0_16] : memref<6x8x8xf32, #tpu.memory_space<vmem>>, vector<1x8x8xf32>
    %24 = vector.shape_cast %23 : vector<1x8x8xf32> to vector<8x8xf32>
    %c3_17 = arith.constant 3 : index
    %c0_18 = arith.constant 0 : index
    %c0_19 = arith.constant 0 : index
    %25 = vector.load %arg9[%c3_17, %c0_18, %c0_19] : memref<4x8x8xf32, #tpu.memory_space<vmem>>, vector<1x8x8xf32>
    %26 = vector.shape_cast %25 : vector<1x8x8xf32> to vector<8x8xf32>
    %27 = vector.shape_cast %24 : vector<8x8xf32> to vector<1x8x8xf32>
    tpu.vector_store %arg9[%c3_17, %c0_18, %c0_19], %27 {strides = array<i32>} : memref<4x8x8xf32, #tpu.memory_space<vmem>>, vector<1x8x8xf32>,
    %c0_20 = arith.constant 0 : index
    %c0_21 = arith.constant 0 : index
    %28 = vector.load %arg2[%c0_20, %c0_21] : memref<8x64xf32, #tpu.memory_space<vmem>>, vector<8x64xf32>
    %c0_22 = arith.constant 0 : index
    %c0_23 = arith.constant 0 : index
    %29 = vector.load %arg3[%c0_22, %c0_23] : memref<1x64xf32, #tpu.memory_space<vmem>>, vector<1x64xf32>
    %c0_24 = arith.constant 0 : index
    %c0_25 = arith.constant 0 : index
    %30 = vector.load %arg4[%c0_24, %c0_25] : memref<8x32xf32, #tpu.memory_space<vmem>>, vector<8x32xf32>
    %c0_26 = arith.constant 0 : index
    %c0_27 = arith.constant 0 : index
    %31 = vector.load %arg5[%c0_26, %c0_27] : memref<1x32xf32, #tpu.memory_space<vmem>>, vector<1x32xf32>
    %c0_28 = arith.constant 0 : index
    %c0_29 = arith.constant 0 : index
    %c0_30 = arith.constant 0 : index
    %32 = vector.load %arg9[%c0_28, %c0_29, %c0_30] : memref<4x8x8xf32, #tpu.memory_space<vmem>>, vector<4x1x8xf32>
    %33 = vector.shape_cast %32 : vector<4x1x8xf32> to vector<4x8xf32>
    %cst = arith.constant dense<0.000000e+00> : vector<4x32xf32>
    %34 = tpu.matmul %33, %30, %cst {dimension_numbers = #tpu.dot_dimension_numbers<[1], [0], [0], [1], [0, 0, 1, 1], [], []>} : vector<4x8xf32>, vector<8x32xf32>, vector<4x32xf32> -> vector<4x32xf32>
    %35 = vector.broadcast %31 : vector<1x32xf32> to vector<4x32xf32>
    %36 = arith.addf %34, %35 : vector<4x32xf32>
    %c0_31 = arith.constant 0 : index
    %c1_32 = arith.constant 1 : index
    %c0_33 = arith.constant 0 : index
    %37 = vector.load %arg9[%c0_31, %c1_32, %c0_33] : memref<4x8x8xf32, #tpu.memory_space<vmem>>, vector<4x1x8xf32>
    %38 = vector.shape_cast %37 : vector<4x1x8xf32> to vector<4x8xf32>
    %cst_34 = arith.constant dense<0.000000e+00> : vector<4x64xf32>
    %39 = tpu.matmul %38, %28, %cst_34 {dimension_numbers = #tpu.dot_dimension_numbers<[1], [0], [0], [1], [0, 0, 1, 1], [], []>} : vector<4x8xf32>, vector<8x64xf32>, vector<4x64xf32> -> vector<4x64xf32>
    %40 = vector.broadcast %29 : vector<1x64xf32> to vector<4x64xf32>
    %41 = arith.addf %39, %40 : vector<4x64xf32>
    %cst_35 = arith.constant dense<0.000000e+00> : vector<4x32xf32>
    %42 = tpu.matmul %38, %30, %cst_35 {dimension_numbers = #tpu.dot_dimension_numbers<[1], [0], [0], [1], [0, 0, 1, 1], [], []>} : vector<4x8xf32>, vector<8x32xf32>, vector<4x32xf32> -> vector<4x32xf32>
    %43 = vector.broadcast %31 : vector<1x32xf32> to vector<4x32xf32>
    %44 = arith.addf %42, %43 : vector<4x32xf32>
    %c0_36 = arith.constant 0 : index
    %c2_37 = arith.constant 2 : index
    %c0_38 = arith.constant 0 : index
    %45 = vector.load %arg9[%c0_36, %c2_37, %c0_38] : memref<4x8x8xf32, #tpu.memory_space<vmem>>, vector<4x1x8xf32>
    %46 = vector.shape_cast %45 : vector<4x1x8xf32> to vector<4x8xf32>
    %cst_39 = arith.constant dense<0.000000e+00> : vector<4x64xf32>
    %47 = tpu.matmul %46, %28, %cst_39 {dimension_numbers = #tpu.dot_dimension_numbers<[1], [0], [0], [1], [0, 0, 1, 1], [], []>} : vector<4x8xf32>, vector<8x64xf32>, vector<4x64xf32> -> vector<4x64xf32>
    %48 = vector.broadcast %29 : vector<1x64xf32> to vector<4x64xf32>
    %49 = arith.addf %47, %48 : vector<4x64xf32>
    %cst_40 = arith.constant dense<0.000000e+00> : vector<4x32xf32>
    %50 = tpu.matmul %46, %30, %cst_40 {dimension_numbers = #tpu.dot_dimension_numbers<[1], [0], [0], [1], [0, 0, 1, 1], [], []>} : vector<4x8xf32>, vector<8x32xf32>, vector<4x32xf32> -> vector<4x32xf32>
    %51 = vector.broadcast %31 : vector<1x32xf32> to vector<4x32xf32>
    %52 = arith.addf %50, %51 : vector<4x32xf32>
    %c0_41 = arith.constant 0 : index
    %c3_42 = arith.constant 3 : index
    %c0_43 = arith.constant 0 : index
    %53 = vector.load %arg9[%c0_41, %c3_42, %c0_43] : memref<4x8x8xf32, #tpu.memory_space<vmem>>, vector<4x1x8xf32>
    %54 = vector.shape_cast %53 : vector<4x1x8xf32> to vector<4x8xf32>
    %cst_44 = arith.constant dense<0.000000e+00> : vector<4x64xf32>
    %55 = tpu.matmul %54, %28, %cst_44 {dimension_numbers = #tpu.dot_dimension_numbers<[1], [0], [0], [1], [0, 0, 1, 1], [], []>} : vector<4x8xf32>, vector<8x64xf32>, vector<4x64xf32> -> vector<4x64xf32>
    %56 = vector.broadcast %29 : vector<1x64xf32> to vector<4x64xf32>
    %57 = arith.addf %55, %56 : vector<4x64xf32>
    %cst_45 = arith.constant dense<0.000000e+00> : vector<4x32xf32>
    %58 = tpu.matmul %54, %30, %cst_45 {dimension_numbers = #tpu.dot_dimension_numbers<[1], [0], [0], [1], [0, 0, 1, 1], [], []>} : vector<4x8xf32>, vector<8x32xf32>, vector<4x32xf32> -> vector<4x32xf32>
    %59 = vector.broadcast %31 : vector<1x32xf32> to vector<4x32xf32>
    %60 = arith.addf %58, %59 : vector<4x32xf32>
    %c0_46 = arith.constant 0 : index
    %c4 = arith.constant 4 : index
    %c0_47 = arith.constant 0 : index
    %61 = vector.load %arg9[%c0_46, %c4, %c0_47] : memref<4x8x8xf32, #tpu.memory_space<vmem>>, vector<4x1x8xf32>
    %62 = vector.shape_cast %61 : vector<4x1x8xf32> to vector<4x8xf32>
    %cst_48 = arith.constant dense<0.000000e+00> : vector<4x64xf32>
    %63 = tpu.matmul %62, %28, %cst_48 {dimension_numbers = #tpu.dot_dimension_numbers<[1], [0], [0], [1], [0, 0, 1, 1], [], []>} : vector<4x8xf32>, vector<8x64xf32>, vector<4x64xf32> -> vector<4x64xf32>
    %64 = vector.broadcast %29 : vector<1x64xf32> to vector<4x64xf32>
    %65 = arith.addf %63, %64 : vector<4x64xf32>
    %cst_49 = arith.constant dense<0.000000e+00> : vector<4x32xf32>
    %66 = tpu.matmul %62, %30, %cst_49 {dimension_numbers = #tpu.dot_dimension_numbers<[1], [0], [0], [1], [0, 0, 1, 1], [], []>} : vector<4x8xf32>, vector<8x32xf32>, vector<4x32xf32> -> vector<4x32xf32>
    %67 = vector.broadcast %31 : vector<1x32xf32> to vector<4x32xf32>
    %68 = arith.addf %66, %67 : vector<4x32xf32>
    %c0_50 = arith.constant 0 : index
    %c5 = arith.constant 5 : index
    %c0_51 = arith.constant 0 : index
    %69 = vector.load %arg9[%c0_50, %c5, %c0_51] : memref<4x8x8xf32, #tpu.memory_space<vmem>>, vector<4x1x8xf32>
    %70 = vector.shape_cast %69 : vector<4x1x8xf32> to vector<4x8xf32>
    %cst_52 = arith.constant dense<0.000000e+00> : vector<4x64xf32>
    %71 = tpu.matmul %70, %28, %cst_52 {dimension_numbers = #tpu.dot_dimension_numbers<[1], [0], [0], [1], [0, 0, 1, 1], [], []>} : vector<4x8xf32>, vector<8x64xf32>, vector<4x64xf32> -> vector<4x64xf32>
    %72 = vector.broadcast %29 : vector<1x64xf32> to vector<4x64xf32>
    %73 = arith.addf %71, %72 : vector<4x64xf32>
    %cst_53 = arith.constant dense<0.000000e+00> : vector<4x32xf32>
    %74 = tpu.matmul %70, %30, %cst_53 {dimension_numbers = #tpu.dot_dimension_numbers<[1], [0], [0], [1], [0, 0, 1, 1], [], []>} : vector<4x8xf32>, vector<8x32xf32>, vector<4x32xf32> -> vector<4x32xf32>
    %75 = vector.broadcast %31 : vector<1x32xf32> to vector<4x32xf32>
    %76 = arith.addf %74, %75 : vector<4x32xf32>
    %c0_54 = arith.constant 0 : index
    %c6 = arith.constant 6 : index
    %c0_55 = arith.constant 0 : index
    %77 = vector.load %arg9[%c0_54, %c6, %c0_55] : memref<4x8x8xf32, #tpu.memory_space<vmem>>, vector<4x1x8xf32>
    %78 = vector.shape_cast %77 : vector<4x1x8xf32> to vector<4x8xf32>
    %cst_56 = arith.constant dense<0.000000e+00> : vector<4x64xf32>
    %79 = tpu.matmul %78, %28, %cst_56 {dimension_numbers = #tpu.dot_dimension_numbers<[1], [0], [0], [1], [0, 0, 1, 1], [], []>} : vector<4x8xf32>, vector<8x64xf32>, vector<4x64xf32> -> vector<4x64xf32>
    %80 = vector.broadcast %29 : vector<1x64xf32> to vector<4x64xf32>
    %81 = arith.addf %79, %80 : vector<4x64xf32>
    %cst_57 = arith.constant dense<0.000000e+00> : vector<4x32xf32>
    %82 = tpu.matmul %78, %30, %cst_57 {dimension_numbers = #tpu.dot_dimension_numbers<[1], [0], [0], [1], [0, 0, 1, 1], [], []>} : vector<4x8xf32>, vector<8x32xf32>, vector<4x32xf32> -> vector<4x32xf32>
    %83 = vector.broadcast %31 : vector<1x32xf32> to vector<4x32xf32>
    %84 = arith.addf %82, %83 : vector<4x32xf32>
    %c0_58 = arith.constant 0 : index
    %c7 = arith.constant 7 : index
    %c0_59 = arith.constant 0 : index
    %85 = vector.load %arg9[%c0_58, %c7, %c0_59] : memref<4x8x8xf32, #tpu.memory_space<vmem>>, vector<4x1x8xf32>
    %86 = vector.shape_cast %85 : vector<4x1x8xf32> to vector<4x8xf32>
    %cst_60 = arith.constant dense<0.000000e+00> : vector<4x64xf32>
    %87 = tpu.matmul %86, %28, %cst_60 {dimension_numbers = #tpu.dot_dimension_numbers<[1], [0], [0], [1], [0, 0, 1, 1], [], []>} : vector<4x8xf32>, vector<8x64xf32>, vector<4x64xf32> -> vector<4x64xf32>
    %88 = vector.broadcast %29 : vector<1x64xf32> to vector<4x64xf32>
    %89 = arith.addf %87, %88 : vector<4x64xf32>
    %cst_61 = arith.constant dense<0.000000e+00> : vector<4x32xf32>
    %90 = tpu.matmul %86, %30, %cst_61 {dimension_numbers = #tpu.dot_dimension_numbers<[1], [0], [0], [1], [0, 0, 1, 1], [], []>} : vector<4x8xf32>, vector<8x32xf32>, vector<4x32xf32> -> vector<4x32xf32>
    %91 = vector.broadcast %31 : vector<1x32xf32> to vector<4x32xf32>
    %92 = arith.addf %90, %91 : vector<4x32xf32>
    %c0_62 = arith.constant 0 : index
    %c0_63 = arith.constant 0 : index
    %93 = vector.load %arg6[%c0_62, %c0_63] : memref<32x64xf32, #tpu.memory_space<vmem>>, vector<32x64xf32>
    %c0_64 = arith.constant 0 : index
    %c0_65 = arith.constant 0 : index
    %94 = vector.load %arg7[%c0_64, %c0_65] : memref<32x32xf32, #tpu.memory_space<vmem>>, vector<32x32xf32>
    %95 = math.tanh %36 : vector<4x32xf32>
    %cst_66 = arith.constant dense<0.000000e+00> : vector<4x64xf32>
    %96 = tpu.matmul %95, %93, %cst_66 {dimension_numbers = #tpu.dot_dimension_numbers<[1], [0], [0], [1], [0, 0, 1, 1], [], []>} : vector<4x32xf32>, vector<32x64xf32>, vector<4x64xf32> -> vector<4x64xf32>
    %97 = arith.addf %96, %41 : vector<4x64xf32>
    %cst_67 = arith.constant 5.000000e-01 : f32
    %98 = vector.broadcast %cst_67 : f32 to vector<4x64xf32>
    %99 = arith.mulf %98, %97 : vector<4x64xf32>
    %100 = math.tanh %99 : vector<4x64xf32>
    %cst_68 = arith.constant 5.000000e-01 : f32
    %101 = vector.broadcast %cst_68 : f32 to vector<4x64xf32>
    %102 = arith.mulf %101, %100 : vector<4x64xf32>
    %cst_69 = arith.constant 5.000000e-01 : f32
    %103 = vector.broadcast %cst_69 : f32 to vector<4x64xf32>
    %104 = arith.addf %102, %103 : vector<4x64xf32>
    %105 = vector.extract_strided_slice %104 {offsets = [0, 0], sizes = [4, 32], strides = [1, 1]} : vector<4x64xf32> to vector<4x32xf32>
    %106 = vector.extract_strided_slice %104 {offsets = [0, 32], sizes = [4, 32], strides = [1, 1]} : vector<4x64xf32> to vector<4x32xf32>
    %107 = arith.mulf %105, %95 : vector<4x32xf32>
    %cst_70 = arith.constant dense<0.000000e+00> : vector<4x32xf32>
    %108 = tpu.matmul %107, %94, %cst_70 {dimension_numbers = #tpu.dot_dimension_numbers<[1], [0], [0], [1], [0, 0, 1, 1], [], []>} : vector<4x32xf32>, vector<32x32xf32>, vector<4x32xf32> -> vector<4x32xf32>
    %109 = arith.addf %108, %44 : vector<4x32xf32>
    %110 = math.tanh %109 : vector<4x32xf32>
    %111 = arith.subf %110, %95 : vector<4x32xf32>
    %112 = arith.mulf %106, %111 : vector<4x32xf32>
    %113 = arith.addf %95, %112 : vector<4x32xf32>
    %cst_71 = arith.constant dense<0.000000e+00> : vector<4x64xf32>
    %114 = tpu.matmul %113, %93, %cst_71 {dimension_numbers = #tpu.dot_dimension_numbers<[1], [0], [0], [1], [0, 0, 1, 1], [], []>} : vector<4x32xf32>, vector<32x64xf32>, vector<4x64xf32> -> vector<4x64xf32>
    %115 = arith.addf %114, %49 : vector<4x64xf32>
    %cst_72 = arith.constant 5.000000e-01 : f32
    %116 = vector.broadcast %cst_72 : f32 to vector<4x64xf32>
    %117 = arith.mulf %116, %115 : vector<4x64xf32>
    %118 = math.tanh %117 : vector<4x64xf32>
    %cst_73 = arith.constant 5.000000e-01 : f32
    %119 = vector.broadcast %cst_73 : f32 to vector<4x64xf32>
    %120 = arith.mulf %119, %118 : vector<4x64xf32>
    %cst_74 = arith.constant 5.000000e-01 : f32
    %121 = vector.broadcast %cst_74 : f32 to vector<4x64xf32>
    %122 = arith.addf %120, %121 : vector<4x64xf32>
    %123 = vector.extract_strided_slice %122 {offsets = [0, 0], sizes = [4, 32], strides = [1, 1]} : vector<4x64xf32> to vector<4x32xf32>
    %124 = vector.extract_strided_slice %122 {offsets = [0, 32], sizes = [4, 32], strides = [1, 1]} : vector<4x64xf32> to vector<4x32xf32>
    %125 = arith.mulf %123, %113 : vector<4x32xf32>
    %cst_75 = arith.constant dense<0.000000e+00> : vector<4x32xf32>
    %126 = tpu.matmul %125, %94, %cst_75 {dimension_numbers = #tpu.dot_dimension_numbers<[1], [0], [0], [1], [0, 0, 1, 1], [], []>} : vector<4x32xf32>, vector<32x32xf32>, vector<4x32xf32> -> vector<4x32xf32>
    %127 = arith.addf %126, %52 : vector<4x32xf32>
    %128 = math.tanh %127 : vector<4x32xf32>
    %129 = arith.subf %128, %113 : vector<4x32xf32>
    %130 = arith.mulf %124, %129 : vector<4x32xf32>
    %131 = arith.addf %113, %130 : vector<4x32xf32>
    %cst_76 = arith.constant dense<0.000000e+00> : vector<4x64xf32>
    %132 = tpu.matmul %131, %93, %cst_76 {dimension_numbers = #tpu.dot_dimension_numbers<[1], [0], [0], [1], [0, 0, 1, 1], [], []>} : vector<4x32xf32>, vector<32x64xf32>, vector<4x64xf32> -> vector<4x64xf32>
    %133 = arith.addf %132, %57 : vector<4x64xf32>
    %cst_77 = arith.constant 5.000000e-01 : f32
    %134 = vector.broadcast %cst_77 : f32 to vector<4x64xf32>
    %135 = arith.mulf %134, %133 : vector<4x64xf32>
    %136 = math.tanh %135 : vector<4x64xf32>
    %cst_78 = arith.constant 5.000000e-01 : f32
    %137 = vector.broadcast %cst_78 : f32 to vector<4x64xf32>
    %138 = arith.mulf %137, %136 : vector<4x64xf32>
    %cst_79 = arith.constant 5.000000e-01 : f32
    %139 = vector.broadcast %cst_79 : f32 to vector<4x64xf32>
    %140 = arith.addf %138, %139 : vector<4x64xf32>
    %141 = vector.extract_strided_slice %140 {offsets = [0, 0], sizes = [4, 32], strides = [1, 1]} : vector<4x64xf32> to vector<4x32xf32>
    %142 = vector.extract_strided_slice %140 {offsets = [0, 32], sizes = [4, 32], strides = [1, 1]} : vector<4x64xf32> to vector<4x32xf32>
    %143 = arith.mulf %141, %131 : vector<4x32xf32>
    %cst_80 = arith.constant dense<0.000000e+00> : vector<4x32xf32>
    %144 = tpu.matmul %143, %94, %cst_80 {dimension_numbers = #tpu.dot_dimension_numbers<[1], [0], [0], [1], [0, 0, 1, 1], [], []>} : vector<4x32xf32>, vector<32x32xf32>, vector<4x32xf32> -> vector<4x32xf32>
    %145 = arith.addf %144, %60 : vector<4x32xf32>
    %146 = math.tanh %145 : vector<4x32xf32>
    %147 = arith.subf %146, %131 : vector<4x32xf32>
    %148 = arith.mulf %142, %147 : vector<4x32xf32>
    %149 = arith.addf %131, %148 : vector<4x32xf32>
    %cst_81 = arith.constant dense<0.000000e+00> : vector<4x64xf32>
    %150 = tpu.matmul %149, %93, %cst_81 {dimension_numbers = #tpu.dot_dimension_numbers<[1], [0], [0], [1], [0, 0, 1, 1], [], []>} : vector<4x32xf32>, vector<32x64xf32>, vector<4x64xf32> -> vector<4x64xf32>
    %151 = arith.addf %150, %65 : vector<4x64xf32>
    %cst_82 = arith.constant 5.000000e-01 : f32
    %152 = vector.broadcast %cst_82 : f32 to vector<4x64xf32>
    %153 = arith.mulf %152, %151 : vector<4x64xf32>
    %154 = math.tanh %153 : vector<4x64xf32>
    %cst_83 = arith.constant 5.000000e-01 : f32
    %155 = vector.broadcast %cst_83 : f32 to vector<4x64xf32>
    %156 = arith.mulf %155, %154 : vector<4x64xf32>
    %cst_84 = arith.constant 5.000000e-01 : f32
    %157 = vector.broadcast %cst_84 : f32 to vector<4x64xf32>
    %158 = arith.addf %156, %157 : vector<4x64xf32>
    %159 = vector.extract_strided_slice %158 {offsets = [0, 0], sizes = [4, 32], strides = [1, 1]} : vector<4x64xf32> to vector<4x32xf32>
    %160 = vector.extract_strided_slice %158 {offsets = [0, 32], sizes = [4, 32], strides = [1, 1]} : vector<4x64xf32> to vector<4x32xf32>
    %161 = arith.mulf %159, %149 : vector<4x32xf32>
    %cst_85 = arith.constant dense<0.000000e+00> : vector<4x32xf32>
    %162 = tpu.matmul %161, %94, %cst_85 {dimension_numbers = #tpu.dot_dimension_numbers<[1], [0], [0], [1], [0, 0, 1, 1], [], []>} : vector<4x32xf32>, vector<32x32xf32>, vector<4x32xf32> -> vector<4x32xf32>
    %163 = arith.addf %162, %68 : vector<4x32xf32>
    %164 = math.tanh %163 : vector<4x32xf32>
    %165 = arith.subf %164, %149 : vector<4x32xf32>
    %166 = arith.mulf %160, %165 : vector<4x32xf32>
    %167 = arith.addf %149, %166 : vector<4x32xf32>
    %cst_86 = arith.constant dense<0.000000e+00> : vector<4x64xf32>
    %168 = tpu.matmul %167, %93, %cst_86 {dimension_numbers = #tpu.dot_dimension_numbers<[1], [0], [0], [1], [0, 0, 1, 1], [], []>} : vector<4x32xf32>, vector<32x64xf32>, vector<4x64xf32> -> vector<4x64xf32>
    %169 = arith.addf %168, %73 : vector<4x64xf32>
    %cst_87 = arith.constant 5.000000e-01 : f32
    %170 = vector.broadcast %cst_87 : f32 to vector<4x64xf32>
    %171 = arith.mulf %170, %169 : vector<4x64xf32>
    %172 = math.tanh %171 : vector<4x64xf32>
    %cst_88 = arith.constant 5.000000e-01 : f32
    %173 = vector.broadcast %cst_88 : f32 to vector<4x64xf32>
    %174 = arith.mulf %173, %172 : vector<4x64xf32>
    %cst_89 = arith.constant 5.000000e-01 : f32
    %175 = vector.broadcast %cst_89 : f32 to vector<4x64xf32>
    %176 = arith.addf %174, %175 : vector<4x64xf32>
    %177 = vector.extract_strided_slice %176 {offsets = [0, 0], sizes = [4, 32], strides = [1, 1]} : vector<4x64xf32> to vector<4x32xf32>
    %178 = vector.extract_strided_slice %176 {offsets = [0, 32], sizes = [4, 32], strides = [1, 1]} : vector<4x64xf32> to vector<4x32xf32>
    %179 = arith.mulf %177, %167 : vector<4x32xf32>
    %cst_90 = arith.constant dense<0.000000e+00> : vector<4x32xf32>
    %180 = tpu.matmul %179, %94, %cst_90 {dimension_numbers = #tpu.dot_dimension_numbers<[1], [0], [0], [1], [0, 0, 1, 1], [], []>} : vector<4x32xf32>, vector<32x32xf32>, vector<4x32xf32> -> vector<4x32xf32>
    %181 = arith.addf %180, %76 : vector<4x32xf32>
    %182 = math.tanh %181 : vector<4x32xf32>
    %183 = arith.subf %182, %167 : vector<4x32xf32>
    %184 = arith.mulf %178, %183 : vector<4x32xf32>
    %185 = arith.addf %167, %184 : vector<4x32xf32>
    %cst_91 = arith.constant dense<0.000000e+00> : vector<4x64xf32>
    %186 = tpu.matmul %185, %93, %cst_91 {dimension_numbers = #tpu.dot_dimension_numbers<[1], [0], [0], [1], [0, 0, 1, 1], [], []>} : vector<4x32xf32>, vector<32x64xf32>, vector<4x64xf32> -> vector<4x64xf32>
    %187 = arith.addf %186, %81 : vector<4x64xf32>
    %cst_92 = arith.constant 5.000000e-01 : f32
    %188 = vector.broadcast %cst_92 : f32 to vector<4x64xf32>
    %189 = arith.mulf %188, %187 : vector<4x64xf32>
    %190 = math.tanh %189 : vector<4x64xf32>
    %cst_93 = arith.constant 5.000000e-01 : f32
    %191 = vector.broadcast %cst_93 : f32 to vector<4x64xf32>
    %192 = arith.mulf %191, %190 : vector<4x64xf32>
    %cst_94 = arith.constant 5.000000e-01 : f32
    %193 = vector.broadcast %cst_94 : f32 to vector<4x64xf32>
    %194 = arith.addf %192, %193 : vector<4x64xf32>
    %195 = vector.extract_strided_slice %194 {offsets = [0, 0], sizes = [4, 32], strides = [1, 1]} : vector<4x64xf32> to vector<4x32xf32>
    %196 = vector.extract_strided_slice %194 {offsets = [0, 32], sizes = [4, 32], strides = [1, 1]} : vector<4x64xf32> to vector<4x32xf32>
    %197 = arith.mulf %195, %185 : vector<4x32xf32>
    %cst_95 = arith.constant dense<0.000000e+00> : vector<4x32xf32>
    %198 = tpu.matmul %197, %94, %cst_95 {dimension_numbers = #tpu.dot_dimension_numbers<[1], [0], [0], [1], [0, 0, 1, 1], [], []>} : vector<4x32xf32>, vector<32x32xf32>, vector<4x32xf32> -> vector<4x32xf32>
    %199 = arith.addf %198, %84 : vector<4x32xf32>
    %200 = math.tanh %199 : vector<4x32xf32>
    %201 = arith.subf %200, %185 : vector<4x32xf32>
    %202 = arith.mulf %196, %201 : vector<4x32xf32>
    %203 = arith.addf %185, %202 : vector<4x32xf32>
    %cst_96 = arith.constant dense<0.000000e+00> : vector<4x64xf32>
    %204 = tpu.matmul %203, %93, %cst_96 {dimension_numbers = #tpu.dot_dimension_numbers<[1], [0], [0], [1], [0, 0, 1, 1], [], []>} : vector<4x32xf32>, vector<32x64xf32>, vector<4x64xf32> -> vector<4x64xf32>
    %205 = arith.addf %204, %89 : vector<4x64xf32>
    %cst_97 = arith.constant 5.000000e-01 : f32
    %206 = vector.broadcast %cst_97 : f32 to vector<4x64xf32>
    %207 = arith.mulf %206, %205 : vector<4x64xf32>
    %208 = math.tanh %207 : vector<4x64xf32>
    %cst_98 = arith.constant 5.000000e-01 : f32
    %209 = vector.broadcast %cst_98 : f32 to vector<4x64xf32>
    %210 = arith.mulf %209, %208 : vector<4x64xf32>
    %cst_99 = arith.constant 5.000000e-01 : f32
    %211 = vector.broadcast %cst_99 : f32 to vector<4x64xf32>
    %212 = arith.addf %210, %211 : vector<4x64xf32>
    %213 = vector.extract_strided_slice %212 {offsets = [0, 0], sizes = [4, 32], strides = [1, 1]} : vector<4x64xf32> to vector<4x32xf32>
    %214 = vector.extract_strided_slice %212 {offsets = [0, 32], sizes = [4, 32], strides = [1, 1]} : vector<4x64xf32> to vector<4x32xf32>
    %215 = arith.mulf %213, %203 : vector<4x32xf32>
    %cst_100 = arith.constant dense<0.000000e+00> : vector<4x32xf32>
    %216 = tpu.matmul %215, %94, %cst_100 {dimension_numbers = #tpu.dot_dimension_numbers<[1], [0], [0], [1], [0, 0, 1, 1], [], []>} : vector<4x32xf32>, vector<32x32xf32>, vector<4x32xf32> -> vector<4x32xf32>
    %217 = arith.addf %216, %92 : vector<4x32xf32>
    %218 = math.tanh %217 : vector<4x32xf32>
    %219 = arith.subf %218, %203 : vector<4x32xf32>
    %220 = arith.mulf %214, %219 : vector<4x32xf32>
    %221 = arith.addf %203, %220 : vector<4x32xf32>
    %222 = tpu.concatenate %95, %113, %131, %149, %167, %185, %203, %221 in 1 : vector<4x32xf32>, vector<4x32xf32>, vector<4x32xf32>, vector<4x32xf32>, vector<4x32xf32>, vector<4x32xf32>, vector<4x32xf32>, vector<4x32xf32> -> vector<4x256xf32>
    %c0_101 = arith.constant 0 : index
    %c0_102 = arith.constant 0 : index
    %223 = vector.load %arg8[%c0_101, %c0_102] : memref<4x256xf32, #tpu.memory_space<vmem>>, vector<4x256xf32>
    tpu.vector_store %arg8[%c0_101, %c0_102], %222 {strides = array<i32>} : memref<4x256xf32, #tpu.memory_space<vmem>>, vector<4x256xf32>,
    return
  }
}

</mosaic_0001>

<llo_original>
// kernel: gru_topology_forward.1
$region0: #{gru_topology_forward.1}
  #allocation0 [shape = 'u32[]', space=smem, size = 0x4, offset = 0x4, fixed_abs, tag = 'smem constant byte address 0x4 - core index']
  #allocation1 [shape = 'u32[144,128]{1,0:T(1,128)}', space=vmem, size = 0x12000, scoped, tag = 'internal scratch']
  #allocation2 [shape = 'f32[4,8,8]{2,1,0:T(8,128)}', space=vmem, size = 0x4000, scoped, tag = 'scratch operand']
  %s0 = inlined_call_operand.hbm [shape: s32[4], index: 0, kind: input, shape index: {}]
  %s1 = inlined_call_operand.hbm [shape: f32[6,8,8], index: 1, kind: input, shape index: {}]
  %s2 = inlined_call_operand.hbm [shape: f32[8,64], index: 2, kind: input, shape index: {}]
  %s3 = inlined_call_operand.vmem [shape: f32[1,64], index: 3, kind: input, shape index: {}]
  %s4 = inlined_call_operand.vmem [shape: f32[8,32], index: 4, kind: input, shape index: {}]
  %s5 = inlined_call_operand.vmem [shape: f32[1,32], index: 5, kind: input, shape index: {}]
  %s6 = inlined_call_operand.hbm [shape: f32[32,64], index: 6, kind: input, shape index: {}]
  %s7 = inlined_call_operand.hbm [shape: f32[32,32], index: 7, kind: input, shape index: {}]
  %s8 = inlined_call_operand.vmem [shape: f32[4,256], index: 8, kind: output, shape index: {}]
  %s9 = sld [smem:[#allocation0]]
  $region62: #{gru_topology_forward.1} parent=0
    _
  %s11 = ssub.s32 1, %s9
  %s12 = scalar_select 0, %s11, %s9
  $region1: #{gru_topology_forward.1} parent=0
    #allocation3 [shape = 'u8[512]{0}', space=smem, size = 0x200, scoped, tag = 'input window, operand 0, single buffered']
    #allocation4 [shape = 's32[1]{0}', space=sflag, size = 0x4, scoped, tag = 'scoped memory for gru_topology_forward.1']
    #allocation5 [shape = 's32[1]{0}', space=sflag, size = 0x4, scoped, tag = 'scoped memory for gru_topology_forward.1']
    #allocation6 [shape = 'u8[24576]{0}', space=vmem, size = 0x6000, scoped, tag = 'input window, operand 1, single buffered']
    #allocation7 [shape = 'u8[4096]{0}', space=vmem, size = 0x1000, scoped, tag = 'input window, operand 2, single buffered']
    #allocation8 [shape = 's32[1]{0}', space=sflag, size = 0x4, scoped, tag = 'scoped memory for gru_topology_forward.1']
    #allocation9 [shape = 'u8[16384]{0}', space=vmem, size = 0x4000, scoped, tag = 'input window, operand 6, single buffered']
    #allocation10 [shape = 'u8[16384]{0}', space=vmem, size = 0x4000, scoped, tag = 'input window, operand 7, single buffered']
    #allocation11 [shape = 's32[1]{0}', space=sflag, size = 0x4, scoped, tag = 'scoped memory for gru_topology_forward.1']
    %13 = vsyncpa [#allocation5], 0
    %14 = vsyncpa [#allocation4], 0
    %15 = vsyncpa [#allocation8], 0
    %16 = vsyncpa [#allocation11], 0
    // Predicated region
    $region2: #{gru_topology_forward.1} parent=1 // pred_check
      _
    $region3: #{gru_topology_forward.1} parent=1 // pred_check_branch
      %18 = sbr.rel (0) target = $region5
    $region4: #{gru_topology_forward.1} parent=1 // pred_region
      %s20 = ssub.s32 16, 16
      %21 = vsyncadd [#allocation5], %s20
      %24 = dma.hbm_to_smem %s0, 16, [#allocation3], [#allocation5]
    $region5: #{gru_topology_forward.1} parent=1 // pred_fallthru
      _
    // Predicated region
    $region6: #{gru_topology_forward.1} parent=1 // pred_check
      _
    $region7: #{gru_topology_forward.1} parent=1 // pred_check_branch
      %26 = sbr.rel (0) target = $region9
    $region8: #{gru_topology_forward.1} parent=1 // pred_region
      %s28 = ssub.s32 768, 768
      %29 = vsyncadd [#allocation4], %s28
      %s30 = sshll.u32 [#allocation6], 4
      %s31 = int_to_ptr.vmem [resolvable:$true] %s30
      %36 = dma.hbm_to_vmem [thread:$0]  %s1, 768, %s31, [#allocation4], 128, 128, 8
    $region9: #{gru_topology_forward.1} parent=1 // pred_fallthru
      _
    // Predicated region
    $region10: #{gru_topology_forward.1} parent=1 // pred_check
      _
    $region11: #{gru_topology_forward.1} parent=1 // pred_check_branch
      %38 = sbr.rel (0) target = $region13
    $region12: #{gru_topology_forward.1} parent=1 // pred_region
      %s40 = ssub.s32 128, 128
      %41 = vsyncadd [#allocation8], %s40
      %s43 = sshll.u32 [#allocation7], 4
      %s44 = int_to_ptr.vmem [resolvable:$true] %s43
      %46 = dma.hbm_to_vmem [thread:$0]  %s2, 128, %s44, [#allocation8]
    $region13: #{gru_topology_forward.1} parent=1 // pred_fallthru
      _
    // Predicated region
    $region14: #{gru_topology_forward.1} parent=1 // pred_check
      _
    $region15: #{gru_topology_forward.1} parent=1 // pred_check_branch
      %48 = sbr.rel (0) target = $region17
    $region16: #{gru_topology_forward.1} parent=1 // pred_region
      _
    $region17: #{gru_topology_forward.1} parent=1 // pred_fallthru
      _
    // Predicated region
    $region18: #{gru_topology_forward.1} parent=1 // pred_check
      _
    $region19: #{gru_topology_forward.1} parent=1 // pred_check_branch
      %50 = sbr.rel (0) target = $region21
    $region20: #{gru_topology_forward.1} parent=1 // pred_region
      _
    $region21: #{gru_topology_forward.1} parent=1 // pred_fallthru
      _
    // Predicated region
    $region22: #{gru_topology_forward.1} parent=1 // pred_check
      _
    $region23: #{gru_topology_forward.1} parent=1 // pred_check_branch
      %52 = sbr.rel (0) target = $region25
    $region24: #{gru_topology_forward.1} parent=1 // pred_region
      _
    $region25: #{gru_topology_forward.1} parent=1 // pred_fallthru
      _
    // Predicated region
    $region26: #{gru_topology_forward.1} parent=1 // pred_check
      _
    $region27: #{gru_topology_forward.1} parent=1 // pred_check_branch
      %54 = sbr.rel (0) target = $region29
    $region28: #{gru_topology_forward.1} parent=1 // pred_region
      %s56 = ssub.s32 512, 512
      %57 = vsyncadd [#allocation8], %s56
      %s58 = sshll.u32 [#allocation9], 4
      %s59 = int_to_ptr.vmem [resolvable:$true] %s58
      %64 = dma.hbm_to_vmem [thread:$0]  %s6, 512, %s59, [#allocation8], 128, 128, 8
    $region29: #{gru_topology_forward.1} parent=1 // pred_fallthru
      _
    // Predicated region
    $region30: #{gru_topology_forward.1} parent=1 // pred_check
      _
    $region31: #{gru_topology_forward.1} parent=1 // pred_check_branch
      %66 = sbr.rel (0) target = $region33
    $region32: #{gru_topology_forward.1} parent=1 // pred_region
      %s68 = ssub.s32 512, 512
      %69 = vsyncadd [#allocation11], %s68
      %s70 = sshll.u32 [#allocation10], 4
      %s71 = int_to_ptr.vmem [resolvable:$true] %s70
      %76 = dma.hbm_to_vmem [thread:$0]  %s7, 512, %s71, [#allocation11], 128, 128, 8
    $region33: #{gru_topology_forward.1} parent=1 // pred_fallthru
      _
    // Predicated region
    $region34: #{gru_topology_forward.1} parent=1 // pred_check
      _
    $region35: #{gru_topology_forward.1} parent=1 // pred_check_branch
      %78 = sbr.rel (0) target = $region37
    $region36: #{gru_topology_forward.1} parent=1 // pred_region
      %79 = dma.done [#allocation5], 16
    $region37: #{gru_topology_forward.1} parent=1 // pred_fallthru
      _
    // Predicated region
    $region38: #{gru_topology_forward.1} parent=1 // pred_check
      _
    $region39: #{gru_topology_forward.1} parent=1 // pred_check_branch
      %81 = sbr.rel (0) target = $region41
    $region40: #{gru_topology_forward.1} parent=1 // pred_region
      %82 = dma.done [#allocation4], 768
    $region41: #{gru_topology_forward.1} parent=1 // pred_fallthru
      _
    // Predicated region
    $region42: #{gru_topology_forward.1} parent=1 // pred_check
      _
    $region43: #{gru_topology_forward.1} parent=1 // pred_check_branch
      %84 = sbr.rel (0) target = $region45
    $region44: #{gru_topology_forward.1} parent=1 // pred_region
      %85 = dma.done [#allocation8], 128
    $region45: #{gru_topology_forward.1} parent=1 // pred_fallthru
      _
    // Predicated region
    $region46: #{gru_topology_forward.1} parent=1 // pred_check
      _
    $region47: #{gru_topology_forward.1} parent=1 // pred_check_branch
      %87 = sbr.rel (0) target = $region49
    $region48: #{gru_topology_forward.1} parent=1 // pred_region
      %88 = dma.done [#allocation8], 512
    $region49: #{gru_topology_forward.1} parent=1 // pred_fallthru
      _
    // Predicated region
    $region50: #{gru_topology_forward.1} parent=1 // pred_check
      _
    $region51: #{gru_topology_forward.1} parent=1 // pred_check_branch
      %90 = sbr.rel (0) target = $region53
    $region52: #{gru_topology_forward.1} parent=1 // pred_region
      %91 = dma.done [#allocation11], 512
    $region53: #{gru_topology_forward.1} parent=1 // pred_fallthru
      _
    %92 = sfence
    %s93 = sld [smem:[#allocation3]]
    %s94 = smul.u32 %s93, 8
    %s95 = scalar_lea.vmem [#allocation6], %s94
    %v96 = vld [vmem:[%s95] sm:$0xff]
    %vm97 = vcmask 64512
    %98 = vst.msk [vmem:[#allocation2] sm:$0xff] %vm97, %v96
    %s99 = sld [smem:[#allocation3 + $0x1]]
    %s100 = smul.u32 %s99, 8
    %s101 = scalar_lea.vmem [#allocation6], %s100
    %v102 = vld [vmem:[%s101] sm:$0xff]
    %s103 = scalar_lea.vmem [#allocation2], 8
    %104 = vst.msk [vmem:[%s103] sm:$0xff] %vm97, %v102
    %s105 = sld [smem:[#allocation3 + $0x2]]
    %s106 = smul.u32 %s105, 8
    %s107 = scalar_lea.vmem [#allocation6], %s106
    %v108 = vld [vmem:[%s107] sm:$0xff]
    %s109 = scalar_lea.vmem [#allocation2], 16
    %110 = vst.msk [vmem:[%s109] sm:$0xff] %vm97, %v108
    %s111 = sld [smem:[#allocation3 + $0x3]]
    %s112 = smul.u32 %s111, 8
    %s113 = scalar_lea.vmem [#allocation6], %s112
    %v114 = vld [vmem:[%s113] sm:$0xff]
    %s115 = scalar_lea.vmem [#allocation2], 24
    %116 = vst.msk [vmem:[%s115] sm:$0xff] %vm97, %v114
    %v117 = vld [vmem:[#allocation7] sm:$0xff]
    %v118 = vld [vmem:[%s3] sm:$0x1]
    %v119 = vld [vmem:[%s4] sm:$0xff]
    %v120 = vld [vmem:[%s5] sm:$0x1]
    %v121 = vld [vmem:[#allocation2] sm:$0x1]
    %v122 = vld [vmem:[#allocation2 + $0x8] sm:$0x1]
    %v123 = vld [vmem:[#allocation2 + $0x10] sm:$0x1]
    %v124 = vld [vmem:[#allocation2 + $0x18] sm:$0x1]
    %v126 = vlaneseq
    %v127 = vshrl.u32 %v126, 7
    %v128 = vsub.s32 0, %v127
    %v129 = vrot.slane %v120, %v128
    %v135 = vrot.slane %v122, 7
    %vm136 = vcmask 1041409
    %v137 = vsel %vm136, %v135, %v121
    %v138 = vrot.slane %v123, 6
    %vm139 = vcmask 1042434
    %v140 = vsel %vm139, %v138, %v137
    %v141 = vrot.slane %v124, 5
    %vm142 = vcmask 1043459
    %v143 = vsel %vm142, %v141, %v140
    %v144 = vsel %vm97, %v143, 0
    %146 = vmatprep.subr.mxu0 0.0
    %147 = vmatpush1.msra.mxu0 %v119
    %148 = vmatprep.subr.mxu0 0.0
    %149 = vmatpush1.msra.mxu0 0.0
    %150 = vmatprep.subr.mxu0 0.0
    %151 = vmatpush1.msra.mxu0 0.0
    %152 = vmatprep.subr.mxu0 0.0
    %153 = vmatpush1.msra.mxu0 0.0
    %154 = vmatprep.subr.mxu0 0.0
    %155 = vmatpush1.msra.mxu0 0.0
    %156 = vmatprep.subr.mxu0 0.0
    %157 = vmatpush1.msra.mxu0 0.0
    %158 = vmatprep.subr.mxu0 0.0
    %159 = vmatpush1.msra.mxu0 0.0
    %160 = vmatprep.subr.mxu0 0.0
    %161 = vmatpush1.msra.mxu0 0.0
    %162 = vmatprep.subr.mxu0 0.0
    %163 = vmatpush1.msra.mxu0 0.0
    %164 = vmatprep.subr.mxu0 0.0
    %165 = vmatpush1.msra.mxu0 0.0
    %166 = vmatprep.subr.mxu0 0.0
    %167 = vmatpush1.msra.mxu0 0.0
    %168 = vmatprep.subr.mxu0 0.0
    %169 = vmatpush1.msra.mxu0 0.0
    %170 = vmatprep.subr.mxu0 0.0
    %171 = vmatpush1.msra.mxu0 0.0
    %172 = vmatprep.subr.mxu0 0.0
    %173 = vmatpush1.msra.mxu0 0.0
    %174 = vmatprep.subr.mxu0 0.0
    %175 = vmatpush1.msra.mxu0 0.0
    %176 = vmatprep.subr.mxu0 0.0
    %177 = vmatpush1.msra.mxu0 0.0
    %178 = vmatprep.subr.mxu0 0.0
    %179 = vmatpush1.msra.mxu0 0.0
    %180 = vmatprep.subr.mxu0 0.0
    %181 = vmatpush1.msra.mxu0 0.0
    %182 = vmatprep.subr.mxu0 0.0
    %183 = vmatpush1.msra.mxu0 0.0
    %184 = vmatprep.subr.mxu0 0.0
    %185 = vmatpush1.msra.mxu0 0.0
    %186 = vmatprep.subr.mxu0 0.0
    %187 = vmatpush1.msra.mxu0 0.0
    %188 = vmatprep.subr.mxu0 0.0
    %189 = vmatpush1.msra.mxu0 0.0
    %190 = vmatprep.subr.mxu0 0.0
    %191 = vmatpush1.msra.mxu0 0.0
    %192 = vmatprep.subr.mxu0 0.0
    %193 = vmatpush1.msra.mxu0 0.0
    %194 = vmatprep.subr.mxu0 0.0
    %195 = vmatpush1.msra.mxu0 0.0
    %196 = vmatprep.subr.mxu0 0.0
    %197 = vmatpush1.msra.mxu0 0.0
    %198 = vmatprep.subr.mxu0 0.0
    %199 = vmatpush1.msra.mxu0 0.0
    %200 = vmatprep.subr.mxu0 0.0
    %201 = vmatpush1.msra.mxu0 0.0
    %202 = vmatprep.subr.mxu0 0.0
    %203 = vmatpush1.msra.mxu0 0.0
    %204 = vmatprep.subr.mxu0 0.0
    %205 = vmatpush1.msra.mxu0 0.0
    %206 = vmatprep.subr.mxu0 0.0
    %207 = vmatpush1.msra.mxu0 0.0
    %208 = vmatprep.subr.mxu0 0.0
    %209 = vmatpush1.msra.mxu0 0.0
    %210 = vmatprep.mubr.f32.mxu0 0.0
    %211 = vmatmul.mubr.f32.gmra.mrb[0].mxu0 %v144
    %v212 = vpop.f32.mrb[0].mxu0
    %v213 = vadd.f32 %v129, %v212
    %v214 = vpop.f32.mrb[0].mxu0
    %215 = vdwg.mxu0
    %v216 = vld [vmem:[#allocation2 + $0x1] sm:$0x1]
    %v217 = vld [vmem:[#allocation2 + $0x9] sm:$0x1]
    %v218 = vld [vmem:[#allocation2 + $0x11] sm:$0x1]
    %v219 = vld [vmem:[#allocation2 + $0x19] sm:$0x1]
    %v221 = vlaneseq
    %v222 = vshrl.u32 %v221, 7
    %v223 = vsub.s32 0, %v222
    %v224 = vrot.slane %v118, %v223
    %v230 = vrot.slane %v217, 7
    %v231 = vsel %vm136, %v230, %v216
    %v232 = vrot.slane %v218, 6
    %v233 = vsel %vm139, %v232, %v231
    %v234 = vrot.slane %v219, 5
    %v235 = vsel %vm142, %v234, %v233
    %v236 = vsel %vm97, %v235, 0
    %238 = vmatprep.subr.mxu0 0.0
    %239 = vmatpush1.msra.mxu0 %v117
    %240 = vmatprep.subr.mxu0 0.0
    %241 = vmatpush1.msra.mxu0 0.0
    %242 = vmatprep.subr.mxu0 0.0
    %243 = vmatpush1.msra.mxu0 0.0
    %244 = vmatprep.subr.mxu0 0.0
    %245 = vmatpush1.msra.mxu0 0.0
    %246 = vmatprep.subr.mxu0 0.0
    %247 = vmatpush1.msra.mxu0 0.0
    %248 = vmatprep.subr.mxu0 0.0
    %249 = vmatpush1.msra.mxu0 0.0
    %250 = vmatprep.subr.mxu0 0.0
    %251 = vmatpush1.msra.mxu0 0.0
    %252 = vmatprep.subr.mxu0 0.0
    %253 = vmatpush1.msra.mxu0 0.0
    %254 = vmatprep.subr.mxu0 0.0
    %255 = vmatpush1.msra.mxu0 0.0
    %256 = vmatprep.subr.mxu0 0.0
    %257 = vmatpush1.msra.mxu0 0.0
    %258 = vmatprep.subr.mxu0 0.0
    %259 = vmatpush1.msra.mxu0 0.0
    %260 = vmatprep.subr.mxu0 0.0
    %261 = vmatpush1.msra.mxu0 0.0
    %262 = vmatprep.subr.mxu0 0.0
    %263 = vmatpush1.msra.mxu0 0.0
    %264 = vmatprep.subr.mxu0 0.0
    %265 = vmatpush1.msra.mxu0 0.0
    %266 = vmatprep.subr.mxu0 0.0
    %267 = vmatpush1.msra.mxu0 0.0
    %268 = vmatprep.subr.mxu0 0.0
    %269 = vmatpush1.msra.mxu0 0.0
    %270 = vmatprep.subr.mxu0 0.0
    %271 = vmatpush1.msra.mxu0 0.0
    %272 = vmatprep.subr.mxu0 0.0
    %273 = vmatpush1.msra.mxu0 0.0
    %274 = vmatprep.subr.mxu0 0.0
    %275 = vmatpush1.msra.mxu0 0.0
    %276 = vmatprep.subr.mxu0 0.0
    %277 = vmatpush1.msra.mxu0 0.0
    %278 = vmatprep.subr.mxu0 0.0
    %279 = vmatpush1.msra.mxu0 0.0
    %280 = vmatprep.subr.mxu0 0.0
    %281 = vmatpush1.msra.mxu0 0.0
    %282 = vmatprep.subr.mxu0 0.0
    %283 = vmatpush1.msra.mxu0 0.0
    %284 = vmatprep.subr.mxu0 0.0
    %285 = vmatpush1.msra.mxu0 0.0
    %286 = vmatprep.subr.mxu0 0.0
    %287 = vmatpush1.msra.mxu0 0.0
    %288 = vmatprep.subr.mxu0 0.0
    %289 = vmatpush1.msra.mxu0 0.0
    %290 = vmatprep.subr.mxu0 0.0
    %291 = vmatpush1.msra.mxu0 0.0
    %292 = vmatprep.subr.mxu0 0.0
    %293 = vmatpush1.msra.mxu0 0.0
    %294 = vmatprep.subr.mxu0 0.0
    %295 = vmatpush1.msra.mxu0 0.0
    %296 = vmatprep.subr.mxu0 0.0
    %297 = vmatpush1.msra.mxu0 0.0
    %298 = vmatprep.subr.mxu0 0.0
    %299 = vmatpush1.msra.mxu0 0.0
    %300 = vmatprep.subr.mxu0 0.0
    %301 = vmatpush1.msra.mxu0 0.0
    %302 = vmatprep.mubr.f32.mxu0 0.0
    %303 = vmatmul.mubr.f32.gmra.mrb[0].mxu0 %v236
    %v304 = vpop.f32.mrb[0].mxu0
    %v305 = vadd.f32 %v224, %v304
    %v306 = vpop.f32.mrb[0].mxu0
    %307 = vdwg.mxu0
    %308 = vmatprep.subr.mxu0 0.0
    %309 = vmatpush1.msra.mxu0 %v119
    %310 = vmatprep.subr.mxu0 0.0
    %311 = vmatpush1.msra.mxu0 0.0
    %312 = vmatprep.subr.mxu0 0.0
    %313 = vmatpush1.msra.mxu0 0.0
    %314 = vmatprep.subr.mxu0 0.0
    %315 = vmatpush1.msra.mxu0 0.0
    %316 = vmatprep.subr.mxu0 0.0
    %317 = vmatpush1.msra.mxu0 0.0
    %318 = vmatprep.subr.mxu0 0.0
    %319 = vmatpush1.msra.mxu0 0.0
    %320 = vmatprep.subr.mxu0 0.0
    %321 = vmatpush1.msra.mxu0 0.0
    %322 = vmatprep.subr.mxu0 0.0
    %323 = vmatpush1.msra.mxu0 0.0
    %324 = vmatprep.subr.mxu0 0.0
    %325 = vmatpush1.msra.mxu0 0.0
    %326 = vmatprep.subr.mxu0 0.0
    %327 = vmatpush1.msra.mxu0 0.0
    %328 = vmatprep.subr.mxu0 0.0
    %329 = vmatpush1.msra.mxu0 0.0
    %330 = vmatprep.subr.mxu0 0.0
    %331 = vmatpush1.msra.mxu0 0.0
    %332 = vmatprep.subr.mxu0 0.0
    %333 = vmatpush1.msra.mxu0 0.0
    %334 = vmatprep.subr.mxu0 0.0
    %335 = vmatpush1.msra.mxu0 0.0
    %336 = vmatprep.subr.mxu0 0.0
    %337 = vmatpush1.msra.mxu0 0.0
    %338 = vmatprep.subr.mxu0 0.0
    %339 = vmatpush1.msra.mxu0 0.0
    %340 = vmatprep.subr.mxu0 0.0
    %341 = vmatpush1.msra.mxu0 0.0
    %342 = vmatprep.subr.mxu0 0.0
    %343 = vmatpush1.msra.mxu0 0.0
    %344 = vmatprep.subr.mxu0 0.0
    %345 = vmatpush1.msra.mxu0 0.0
    %346 = vmatprep.subr.mxu0 0.0
    %347 = vmatpush1.msra.mxu0 0.0
    %348 = vmatprep.subr.mxu0 0.0
    %349 = vmatpush1.msra.mxu0 0.0
    %350 = vmatprep.subr.mxu0 0.0
    %351 = vmatpush1.msra.mxu0 0.0
    %352 = vmatprep.subr.mxu0 0.0
    %353 = vmatpush1.msra.mxu0 0.0
    %354 = vmatprep.subr.mxu0 0.0
    %355 = vmatpush1.msra.mxu0 0.0
    %356 = vmatprep.subr.mxu0 0.0
    %357 = vmatpush1.msra.mxu0 0.0
    %358 = vmatprep.subr.mxu0 0.0
    %359 = vmatpush1.msra.mxu0 0.0
    %360 = vmatprep.subr.mxu0 0.0
    %361 = vmatpush1.msra.mxu0 0.0
    %362 = vmatprep.subr.mxu0 0.0
    %363 = vmatpush1.msra.mxu0 0.0
    %364 = vmatprep.subr.mxu0 0.0
    %365 = vmatpush1.msra.mxu0 0.0
    %366 = vmatprep.subr.mxu0 0.0
    %367 = vmatpush1.msra.mxu0 0.0
    %368 = vmatprep.subr.mxu0 0.0
    %369 = vmatpush1.msra.mxu0 0.0
    %370 = vmatprep.subr.mxu0 0.0
    %371 = vmatpush1.msra.mxu0 0.0
    %372 = vmatprep.mubr.f32.mxu0 0.0
    %373 = vmatmul.mubr.f32.gmra.mrb[0].mxu0 %v236
    %v374 = vpop.f32.mrb[0].mxu0
    %v375 = vadd.f32 %v129, %v374
    %v376 = vpop.f32.mrb[0].mxu0
    %377 = vdwg.mxu0
    %v378 = vld [vmem:[#allocation2 + $0x2] sm:$0x1]
    %v379 = vld [vmem:[#allocation2 + $0xa] sm:$0x1]
    %v380 = vld [vmem:[#allocation2 + $0x12] sm:$0x1]
    %v381 = vld [vmem:[#allocation2 + $0x1a] sm:$0x1]
    %v386 = vrot.slane %v379, 7
    %v387 = vsel %vm136, %v386, %v378
    %v388 = vrot.slane %v380, 6
    %v389 = vsel %vm139, %v388, %v387
    %v390 = vrot.slane %v381, 5
    %v391 = vsel %vm142, %v390, %v389
    %v392 = vsel %vm97, %v391, 0
    %394 = vmatprep.subr.mxu0 0.0
    %395 = vmatpush1.msra.mxu0 %v117
    %396 = vmatprep.subr.mxu0 0.0
    %397 = vmatpush1.msra.mxu0 0.0
    %398 = vmatprep.subr.mxu0 0.0
    %399 = vmatpush1.msra.mxu0 0.0
    %400 = vmatprep.subr.mxu0 0.0
    %401 = vmatpush1.msra.mxu0 0.0
    %402 = vmatprep.subr.mxu0 0.0
    %403 = vmatpush1.msra.mxu0 0.0
    %404 = vmatprep.subr.mxu0 0.0
    %405 = vmatpush1.msra.mxu0 0.0
    %406 = vmatprep.subr.mxu0 0.0
    %407 = vmatpush1.msra.mxu0 0.0
    %408 = vmatprep.subr.mxu0 0.0
    %409 = vmatpush1.msra.mxu0 0.0
    %410 = vmatprep.subr.mxu0 0.0
    %411 = vmatpush1.msra.mxu0 0.0
    %412 = vmatprep.subr.mxu0 0.0
    %413 = vmatpush1.msra.mxu0 0.0
    %414 = vmatprep.subr.mxu0 0.0
    %415 = vmatpush1.msra.mxu0 0.0
    %416 = vmatprep.subr.mxu0 0.0
    %417 = vmatpush1.msra.mxu0 0.0
    %418 = vmatprep.subr.mxu0 0.0
    %419 = vmatpush1.msra.mxu0 0.0
    %420 = vmatprep.subr.mxu0 0.0
    %421 = vmatpush1.msra.mxu0 0.0
    %422 = vmatprep.subr.mxu0 0.0
    %423 = vmatpush1.msra.mxu0 0.0
    %424 = vmatprep.subr.mxu0 0.0
    %425 = vmatpush1.msra.mxu0 0.0
    %426 = vmatprep.subr.mxu0 0.0
    %427 = vmatpush1.msra.mxu0 0.0
    %428 = vmatprep.subr.mxu0 0.0
    %429 = vmatpush1.msra.mxu0 0.0
    %430 = vmatprep.subr.mxu0 0.0
    %431 = vmatpush1.msra.mxu0 0.0
    %432 = vmatprep.subr.mxu0 0.0
    %433 = vmatpush1.msra.mxu0 0.0
    %434 = vmatprep.subr.mxu0 0.0
    %435 = vmatpush1.msra.mxu0 0.0
    %436 = vmatprep.subr.mxu0 0.0
    %437 = vmatpush1.msra.mxu0 0.0
    %438 = vmatprep.subr.mxu0 0.0
    %439 = vmatpush1.msra.mxu0 0.0
    %440 = vmatprep.subr.mxu0 0.0
    %441 = vmatpush1.msra.mxu0 0.0
    %442 = vmatprep.subr.mxu0 0.0
    %443 = vmatpush1.msra.mxu0 0.0
    %444 = vmatprep.subr.mxu0 0.0
    %445 = vmatpush1.msra.mxu0 0.0
    %446 = vmatprep.subr.mxu0 0.0
    %447 = vmatpush1.msra.mxu0 0.0
    %448 = vmatprep.subr.mxu0 0.0
    %449 = vmatpush1.msra.mxu0 0.0
    %450 = vmatprep.subr.mxu0 0.0
    %451 = vmatpush1.msra.mxu0 0.0
    %452 = vmatprep.subr.mxu0 0.0
    %453 = vmatpush1.msra.mxu0 0.0
    %454 = vmatprep.subr.mxu0 0.0
    %455 = vmatpush1.msra.mxu0 0.0
    %456 = vmatprep.subr.mxu0 0.0
    %457 = vmatpush1.msra.mxu0 0.0
    %458 = vmatprep.mubr.f32.mxu0 0.0
    %459 = vmatmul.mubr.f32.gmra.mrb[0].mxu0 %v392
    %v460 = vpop.f32.mrb[0].mxu0
    %v461 = vadd.f32 %v224, %v460
    %v462 = vpop.f32.mrb[0].mxu0
    %463 = vdwg.mxu0
    %464 = vmatprep.subr.mxu0 0.0
    %465 = vmatpush1.msra.mxu0 %v119
    %466 = vmatprep.subr.mxu0 0.0
    %467 = vmatpush1.msra.mxu0 0.0
    %468 = vmatprep.subr.mxu0 0.0
    %469 = vmatpush1.msra.mxu0 0.0
    %470 = vmatprep.subr.mxu0 0.0
    %471 = vmatpush1.msra.mxu0 0.0
    %472 = vmatprep.subr.mxu0 0.0
    %473 = vmatpush1.msra.mxu0 0.0
    %474 = vmatprep.subr.mxu0 0.0
    %475 = vmatpush1.msra.mxu0 0.0
    %476 = vmatprep.subr.mxu0 0.0
    %477 = vmatpush1.msra.mxu0 0.0
    %478 = vmatprep.subr.mxu0 0.0
    %479 = vmatpush1.msra.mxu0 0.0
    %480 = vmatprep.subr.mxu0 0.0
    %481 = vmatpush1.msra.mxu0 0.0
    %482 = vmatprep.subr.mxu0 0.0
    %483 = vmatpush1.msra.mxu0 0.0
    %484 = vmatprep.subr.mxu0 0.0
    %485 = vmatpush1.msra.mxu0 0.0
    %486 = vmatprep.subr.mxu0 0.0
    %487 = vmatpush1.msra.mxu0 0.0
    %488 = vmatprep.subr.mxu0 0.0
    %489 = vmatpush1.msra.mxu0 0.0
    %490 = vmatprep.subr.mxu0 0.0
    %491 = vmatpush1.msra.mxu0 0.0
    %492 = vmatprep.subr.mxu0 0.0
    %493 = vmatpush1.msra.mxu0 0.0
    %494 = vmatprep.subr.mxu0 0.0
    %495 = vmatpush1.msra.mxu0 0.0
    %496 = vmatprep.subr.mxu0 0.0
    %497 = vmatpush1.msra.mxu0 0.0
    %498 = vmatprep.subr.mxu0 0.0
    %499 = vmatpush1.msra.mxu0 0.0
    %500 = vmatprep.subr.mxu0 0.0
    %501 = vmatpush1.msra.mxu0 0.0
    %502 = vmatprep.subr.mxu0 0.0
    %503 = vmatpush1.msra.mxu0 0.0
    %504 = vmatprep.subr.mxu0 0.0
    %505 = vmatpush1.msra.mxu0 0.0
    %506 = vmatprep.subr.mxu0 0.0
    %507 = vmatpush1.msra.mxu0 0.0
    %508 = vmatprep.subr.mxu0 0.0
    %509 = vmatpush1.msra.mxu0 0.0
    %510 = vmatprep.subr.mxu0 0.0
    %511 = vmatpush1.msra.mxu0 0.0
    %512 = vmatprep.subr.mxu0 0.0
    %513 = vmatpush1.msra.mxu0 0.0
    %514 = vmatprep.subr.mxu0 0.0
    %515 = vmatpush1.msra.mxu0 0.0
    %516 = vmatprep.subr.mxu0 0.0
    %517 = vmatpush1.msra.mxu0 0.0
    %518 = vmatprep.subr.mxu0 0.0
    %519 = vmatpush1.msra.mxu0 0.0
    %520 = vmatprep.subr.mxu0 0.0
    %521 = vmatpush1.msra.mxu0 0.0
    %522 = vmatprep.subr.mxu0 0.0
    %523 = vmatpush1.msra.mxu0 0.0
    %524 = vmatprep.subr.mxu0 0.0
    %525 = vmatpush1.msra.mxu0 0.0
    %526 = vmatprep.subr.mxu0 0.0
    %527 = vmatpush1.msra.mxu0 0.0
    %528 = vmatprep.mubr.f32.mxu0 0.0
    %529 = vmatmul.mubr.f32.gmra.mrb[0].mxu0 %v392
    %v530 = vpop.f32.mrb[0].mxu0
    %v531 = vadd.f32 %v129, %v530
    %v532 = vpop.f32.mrb[0].mxu0
    %533 = vdwg.mxu0
    %v534 = vld [vmem:[#allocation2 + $0x3] sm:$0x1]
    %v535 = vld [vmem:[#allocation2 + $0xb] sm:$0x1]
    %v536 = vld [vmem:[#allocation2 + $0x13] sm:$0x1]
    %v537 = vld [vmem:[#allocation2 + $0x1b] sm:$0x1]
    %v542 = vrot.slane %v535, 7
    %v543 = vsel %vm136, %v542, %v534
    %v544 = vrot.slane %v536, 6
    %v545 = vsel %vm139, %v544, %v543
    %v546 = vrot.slane %v537, 5
    %v547 = vsel %vm142, %v546, %v545
    %v548 = vsel %vm97, %v547, 0
    %550 = vmatprep.subr.mxu0 0.0
    %551 = vmatpush1.msra.mxu0 %v117
    %552 = vmatprep.subr.mxu0 0.0
    %553 = vmatpush1.msra.mxu0 0.0
    %554 = vmatprep.subr.mxu0 0.0
    %555 = vmatpush1.msra.mxu0 0.0
    %556 = vmatprep.subr.mxu0 0.0
    %557 = vmatpush1.msra.mxu0 0.0
    %558 = vmatprep.subr.mxu0 0.0
    %559 = vmatpush1.msra.mxu0 0.0
    %560 = vmatprep.subr.mxu0 0.0
    %561 = vmatpush1.msra.mxu0 0.0
    %562 = vmatprep.subr.mxu0 0.0
    %563 = vmatpush1.msra.mxu0 0.0
    %564 = vmatprep.subr.mxu0 0.0
    %565 = vmatpush1.msra.mxu0 0.0
    %566 = vmatprep.subr.mxu0 0.0
    %567 = vmatpush1.msra.mxu0 0.0
    %568 = vmatprep.subr.mxu0 0.0
    %569 = vmatpush1.msra.mxu0 0.0
    %570 = vmatprep.subr.mxu0 0.0
    %571 = vmatpush1.msra.mxu0 0.0
    %572 = vmatprep.subr.mxu0 0.0
    %573 = vmatpush1.msra.mxu0 0.0
    %574 = vmatprep.subr.mxu0 0.0
    %575 = vmatpush1.msra.mxu0 0.0
    %576 = vmatprep.subr.mxu0 0.0
    %577 = vmatpush1.msra.mxu0 0.0
    %578 = vmatprep.subr.mxu0 0.0
    %579 = vmatpush1.msra.mxu0 0.0
    %580 = vmatprep.subr.mxu0 0.0
    %581 = vmatpush1.msra.mxu0 0.0
    %582 = vmatprep.subr.mxu0 0.0
    %583 = vmatpush1.msra.mxu0 0.0
    %584 = vmatprep.subr.mxu0 0.0
    %585 = vmatpush1.msra.mxu0 0.0
    %586 = vmatprep.subr.mxu0 0.0
    %587 = vmatpush1.msra.mxu0 0.0
    %588 = vmatprep.subr.mxu0 0.0
    %589 = vmatpush1.msra.mxu0 0.0
    %590 = vmatprep.subr.mxu0 0.0
    %591 = vmatpush1.msra.mxu0 0.0
    %592 = vmatprep.subr.mxu0 0.0
    %593 = vmatpush1.msra.mxu0 0.0
    %594 = vmatprep.subr.mxu0 0.0
    %595 = vmatpush1.msra.mxu0 0.0
    %596 = vmatprep.subr.mxu0 0.0
    %597 = vmatpush1.msra.mxu0 0.0
    %598 = vmatprep.subr.mxu0 0.0
    %599 = vmatpush1.msra.mxu0 0.0
    %600 = vmatprep.subr.mxu0 0.0
    %601 = vmatpush1.msra.mxu0 0.0
    %602 = vmatprep.subr.mxu0 0.0
    %603 = vmatpush1.msra.mxu0 0.0
    %604 = vmatprep.subr.mxu0 0.0
    %605 = vmatpush1.msra.mxu0 0.0
    %606 = vmatprep.subr.mxu0 0.0
    %607 = vmatpush1.msra.mxu0 0.0
    %608 = vmatprep.subr.mxu0 0.0
    %609 = vmatpush1.msra.mxu0 0.0
    %610 = vmatprep.subr.mxu0 0.0
    %611 = vmatpush1.msra.mxu0 0.0
    %612 = vmatprep.subr.mxu0 0.0
    %613 = vmatpush1.msra.mxu0 0.0
    %614 = vmatprep.mubr.f32.mxu0 0.0
    %615 = vmatmul.mubr.f32.gmra.mrb[0].mxu0 %v548
    %v616 = vpop.f32.mrb[0].mxu0
    %v617 = vadd.f32 %v224, %v616
    %v618 = vpop.f32.mrb[0].mxu0
    %619 = vdwg.mxu0
    %620 = vmatprep.subr.mxu0 0.0
    %621 = vmatpush1.msra.mxu0 %v119
    %622 = vmatprep.subr.mxu0 0.0
    %623 = vmatpush1.msra.mxu0 0.0
    %624 = vmatprep.subr.mxu0 0.0
    %625 = vmatpush1.msra.mxu0 0.0
    %626 = vmatprep.subr.mxu0 0.0
    %627 = vmatpush1.msra.mxu0 0.0
    %628 = vmatprep.subr.mxu0 0.0
    %629 = vmatpush1.msra.mxu0 0.0
    %630 = vmatprep.subr.mxu0 0.0
    %631 = vmatpush1.msra.mxu0 0.0
    %632 = vmatprep.subr.mxu0 0.0
    %633 = vmatpush1.msra.mxu0 0.0
    %634 = vmatprep.subr.mxu0 0.0
    %635 = vmatpush1.msra.mxu0 0.0
    %636 = vmatprep.subr.mxu0 0.0
    %637 = vmatpush1.msra.mxu0 0.0
    %638 = vmatprep.subr.mxu0 0.0
    %639 = vmatpush1.msra.mxu0 0.0
    %640 = vmatprep.subr.mxu0 0.0
    %641 = vmatpush1.msra.mxu0 0.0
    %642 = vmatprep.subr.mxu0 0.0
    %643 = vmatpush1.msra.mxu0 0.0
    %644 = vmatprep.subr.mxu0 0.0
    %645 = vmatpush1.msra.mxu0 0.0
    %646 = vmatprep.subr.mxu0 0.0
    %647 = vmatpush1.msra.mxu0 0.0
    %648 = vmatprep.subr.mxu0 0.0
    %649 = vmatpush1.msra.mxu0 0.0
    %650 = vmatprep.subr.mxu0 0.0
    %651 = vmatpush1.msra.mxu0 0.0
    %652 = vmatprep.subr.mxu0 0.0
    %653 = vmatpush1.msra.mxu0 0.0
    %654 = vmatprep.subr.mxu0 0.0
    %655 = vmatpush1.msra.mxu0 0.0
    %656 = vmatprep.subr.mxu0 0.0
    %657 = vmatpush1.msra.mxu0 0.0
    %658 = vmatprep.subr.mxu0 0.0
    %659 = vmatpush1.msra.mxu0 0.0
    %660 = vmatprep.subr.mxu0 0.0
    %661 = vmatpush1.msra.mxu0 0.0
    %662 = vmatprep.subr.mxu0 0.0
    %663 = vmatpush1.msra.mxu0 0.0
    %664 = vmatprep.subr.mxu0 0.0
    %665 = vmatpush1.msra.mxu0 0.0
    %666 = vmatprep.subr.mxu0 0.0
    %667 = vmatpush1.msra.mxu0 0.0
    %668 = vmatprep.subr.mxu0 0.0
    %669 = vmatpush1.msra.mxu0 0.0
    %670 = vmatprep.subr.mxu0 0.0
    %671 = vmatpush1.msra.mxu0 0.0
    %672 = vmatprep.subr.mxu0 0.0
    %673 = vmatpush1.msra.mxu0 0.0
    %674 = vmatprep.subr.mxu0 0.0
    %675 = vmatpush1.msra.mxu0 0.0
    %676 = vmatprep.subr.mxu0 0.0
    %677 = vmatpush1.msra.mxu0 0.0
    %678 = vmatprep.subr.mxu0 0.0
    %679 = vmatpush1.msra.mxu0 0.0
    %680 = vmatprep.subr.mxu0 0.0
    %681 = vmatpush1.msra.mxu0 0.0
    %682 = vmatprep.subr.mxu0 0.0
    %683 = vmatpush1.msra.mxu0 0.0
    %684 = vmatprep.mubr.f32.mxu0 0.0
    %685 = vmatmul.mubr.f32.gmra.mrb[0].mxu0 %v548
    %v686 = vpop.f32.mrb[0].mxu0
    %v687 = vadd.f32 %v129, %v686
    %v688 = vpop.f32.mrb[0].mxu0
    %689 = vdwg.mxu0
    %v690 = vld [vmem:[#allocation2 + $0x4] sm:$0x1]
    %v691 = vld [vmem:[#allocation2 + $0xc] sm:$0x1]
    %v692 = vld [vmem:[#allocation2 + $0x14] sm:$0x1]
    %v693 = vld [vmem:[#allocation2 + $0x1c] sm:$0x1]
    %v698 = vrot.slane %v691, 7
    %v699 = vsel %vm136, %v698, %v690
    %v700 = vrot.slane %v692, 6
    %v701 = vsel %vm139, %v700, %v699
    %v702 = vrot.slane %v693, 5
    %v703 = vsel %vm142, %v702, %v701
    %v704 = vsel %vm97, %v703, 0
    %706 = vmatprep.subr.mxu0 0.0
    %707 = vmatpush1.msra.mxu0 %v117
    %708 = vmatprep.subr.mxu0 0.0
    %709 = vmatpush1.msra.mxu0 0.0
    %710 = vmatprep.subr.mxu0 0.0
    %711 = vmatpush1.msra.mxu0 0.0
    %712 = vmatprep.subr.mxu0 0.0
    %713 = vmatpush1.msra.mxu0 0.0
    %714 = vmatprep.subr.mxu0 0.0
    %715 = vmatpush1.msra.mxu0 0.0
    %716 = vmatprep.subr.mxu0 0.0
    %717 = vmatpush1.msra.mxu0 0.0
    %718 = vmatprep.subr.mxu0 0.0
    %719 = vmatpush1.msra.mxu0 0.0
    %720 = vmatprep.subr.mxu0 0.0
    %721 = vmatpush1.msra.mxu0 0.0
    %722 = vmatprep.subr.mxu0 0.0
    %723 = vmatpush1.msra.mxu0 0.0
    %724 = vmatprep.subr.mxu0 0.0
    %725 = vmatpush1.msra.mxu0 0.0
    %726 = vmatprep.subr.mxu0 0.0
    %727 = vmatpush1.msra.mxu0 0.0
    %728 = vmatprep.subr.mxu0 0.0
    %729 = vmatpush1.msra.mxu0 0.0
    %730 = vmatprep.subr.mxu0 0.0
    %731 = vmatpush1.msra.mxu0 0.0
    %732 = vmatprep.subr.mxu0 0.0
    %733 = vmatpush1.msra.mxu0 0.0
    %734 = vmatprep.subr.mxu0 0.0
    %735 = vmatpush1.msra.mxu0 0.0
    %736 = vmatprep.subr.mxu0 0.0
    %737 = vmatpush1.msra.mxu0 0.0
    %738 = vmatprep.subr.mxu0 0.0
    %739 = vmatpush1.msra.mxu0 0.0
    %740 = vmatprep.subr.mxu0 0.0
    %741 = vmatpush1.msra.mxu0 0.0
    %742 = vmatprep.subr.mxu0 0.0
    %743 = vmatpush1.msra.mxu0 0.0
    %744 = vmatprep.subr.mxu0 0.0
    %745 = vmatpush1.msra.mxu0 0.0
    %746 = vmatprep.subr.mxu0 0.0
    %747 = vmatpush1.msra.mxu0 0.0
    %748 = vmatprep.subr.mxu0 0.0
    %749 = vmatpush1.msra.mxu0 0.0
    %750 = vmatprep.subr.mxu0 0.0
    %751 = vmatpush1.msra.mxu0 0.0
    %752 = vmatprep.subr.mxu0 0.0
    %753 = vmatpush1.msra.mxu0 0.0
    %754 = vmatprep.subr.mxu0 0.0
    %755 = vmatpush1.msra.mxu0 0.0
    %756 = vmatprep.subr.mxu0 0.0
    %757 = vmatpush1.msra.mxu0 0.0
    %758 = vmatprep.subr.mxu0 0.0
    %759 = vmatpush1.msra.mxu0 0.0
    %760 = vmatprep.subr.mxu0 0.0
    %761 = vmatpush1.msra.mxu0 0.0
    %762 = vmatprep.subr.mxu0 0.0
    %763 = vmatpush1.msra.mxu0 0.0
    %764 = vmatprep.subr.mxu0 0.0
    %765 = vmatpush1.msra.mxu0 0.0
    %766 = vmatprep.subr.mxu0 0.0
    %767 = vmatpush1.msra.mxu0 0.0
    %768 = vmatprep.subr.mxu0 0.0
    %769 = vmatpush1.msra.mxu0 0.0
    %770 = vmatprep.mubr.f32.mxu0 0.0
    %771 = vmatmul.mubr.f32.gmra.mrb[0].mxu0 %v704
    %v772 = vpop.f32.mrb[0].mxu0
    %v773 = vadd.f32 %v224, %v772
    %v774 = vpop.f32.mrb[0].mxu0
    %775 = vdwg.mxu0
    %776 = vmatprep.subr.mxu0 0.0
    %777 = vmatpush1.msra.mxu0 %v119
    %778 = vmatprep.subr.mxu0 0.0
    %779 = vmatpush1.msra.mxu0 0.0
    %780 = vmatprep.subr.mxu0 0.0
    %781 = vmatpush1.msra.mxu0 0.0
    %782 = vmatprep.subr.mxu0 0.0
    %783 = vmatpush1.msra.mxu0 0.0
    %784 = vmatprep.subr.mxu0 0.0
    %785 = vmatpush1.msra.mxu0 0.0
    %786 = vmatprep.subr.mxu0 0.0
    %787 = vmatpush1.msra.mxu0 0.0
    %788 = vmatprep.subr.mxu0 0.0
    %789 = vmatpush1.msra.mxu0 0.0
    %790 = vmatprep.subr.mxu0 0.0
    %791 = vmatpush1.msra.mxu0 0.0
    %792 = vmatprep.subr.mxu0 0.0
    %793 = vmatpush1.msra.mxu0 0.0
    %794 = vmatprep.subr.mxu0 0.0
    %795 = vmatpush1.msra.mxu0 0.0
    %796 = vmatprep.subr.mxu0 0.0
    %797 = vmatpush1.msra.mxu0 0.0
    %798 = vmatprep.subr.mxu0 0.0
    %799 = vmatpush1.msra.mxu0 0.0
    %800 = vmatprep.subr.mxu0 0.0
    %801 = vmatpush1.msra.mxu0 0.0
    %802 = vmatprep.subr.mxu0 0.0
    %803 = vmatpush1.msra.mxu0 0.0
    %804 = vmatprep.subr.mxu0 0.0
    %805 = vmatpush1.msra.mxu0 0.0
    %806 = vmatprep.subr.mxu0 0.0
    %807 = vmatpush1.msra.mxu0 0.0
    %808 = vmatprep.subr.mxu0 0.0
    %809 = vmatpush1.msra.mxu0 0.0
    %810 = vmatprep.subr.mxu0 0.0
    %811 = vmatpush1.msra.mxu0 0.0
    %812 = vmatprep.subr.mxu0 0.0
    %813 = vmatpush1.msra.mxu0 0.0
    %814 = vmatprep.subr.mxu0 0.0
    %815 = vmatpush1.msra.mxu0 0.0
    %816 = vmatprep.subr.mxu0 0.0
    %817 = vmatpush1.msra.mxu0 0.0
    %818 = vmatprep.subr.mxu0 0.0
    %819 = vmatpush1.msra.mxu0 0.0
    %820 = vmatprep.subr.mxu0 0.0
    %821 = vmatpush1.msra.mxu0 0.0
    %822 = vmatprep.subr.mxu0 0.0
    %823 = vmatpush1.msra.mxu0 0.0
    %824 = vmatprep.subr.mxu0 0.0
    %825 = vmatpush1.msra.mxu0 0.0
    %826 = vmatprep.subr.mxu0 0.0
    %827 = vmatpush1.msra.mxu0 0.0
    %828 = vmatprep.subr.mxu0 0.0
    %829 = vmatpush1.msra.mxu0 0.0
    %830 = vmatprep.subr.mxu0 0.0
    %831 = vmatpush1.msra.mxu0 0.0
    %832 = vmatprep.subr.mxu0 0.0
    %833 = vmatpush1.msra.mxu0 0.0
    %834 = vmatprep.subr.mxu0 0.0
    %835 = vmatpush1.msra.mxu0 0.0
    %836 = vmatprep.subr.mxu0 0.0
    %837 = vmatpush1.msra.mxu0 0.0
    %838 = vmatprep.subr.mxu0 0.0
    %839 = vmatpush1.msra.mxu0 0.0
    %840 = vmatprep.mubr.f32.mxu0 0.0
    %841 = vmatmul.mubr.f32.gmra.mrb[0].mxu0 %v704
    %v842 = vpop.f32.mrb[0].mxu0
    %v843 = vadd.f32 %v129, %v842
    %v844 = vpop.f32.mrb[0].mxu0
    %845 = vdwg.mxu0
    %v846 = vld [vmem:[#allocation2 + $0x5] sm:$0x1]
    %v847 = vld [vmem:[#allocation2 + $0xd] sm:$0x1]
    %v848 = vld [vmem:[#allocation2 + $0x15] sm:$0x1]
    %v849 = vld [vmem:[#allocation2 + $0x1d] sm:$0x1]
    %v854 = vrot.slane %v847, 7
    %v855 = vsel %vm136, %v854, %v846
    %v856 = vrot.slane %v848, 6
    %v857 = vsel %vm139, %v856, %v855
    %v858 = vrot.slane %v849, 5
    %v859 = vsel %vm142, %v858, %v857
    %v860 = vsel %vm97, %v859, 0
    %862 = vmatprep.subr.mxu0 0.0
    %863 = vmatpush1.msra.mxu0 %v117
    %864 = vmatprep.subr.mxu0 0.0
    %865 = vmatpush1.msra.mxu0 0.0
    %866 = vmatprep.subr.mxu0 0.0
    %867 = vmatpush1.msra.mxu0 0.0
    %868 = vmatprep.subr.mxu0 0.0
    %869 = vmatpush1.msra.mxu0 0.0
    %870 = vmatprep.subr.mxu0 0.0
    %871 = vmatpush1.msra.mxu0 0.0
    %872 = vmatprep.subr.mxu0 0.0
    %873 = vmatpush1.msra.mxu0 0.0
    %874 = vmatprep.subr.mxu0 0.0
    %875 = vmatpush1.msra.mxu0 0.0
    %876 = vmatprep.subr.mxu0 0.0
    %877 = vmatpush1.msra.mxu0 0.0
    %878 = vmatprep.subr.mxu0 0.0
    %879 = vmatpush1.msra.mxu0 0.0
    %880 = vmatprep.subr.mxu0 0.0
    %881 = vmatpush1.msra.mxu0 0.0
    %882 = vmatprep.subr.mxu0 0.0
    %883 = vmatpush1.msra.mxu0 0.0
    %884 = vmatprep.subr.mxu0 0.0
    %885 = vmatpush1.msra.mxu0 0.0
    %886 = vmatprep.subr.mxu0 0.0
    %887 = vmatpush1.msra.mxu0 0.0
    %888 = vmatprep.subr.mxu0 0.0
    %889 = vmatpush1.msra.mxu0 0.0
    %890 = vmatprep.subr.mxu0 0.0
    %891 = vmatpush1.msra.mxu0 0.0
    %892 = vmatprep.subr.mxu0 0.0
    %893 = vmatpush1.msra.mxu0 0.0
    %894 = vmatprep.subr.mxu0 0.0
    %895 = vmatpush1.msra.mxu0 0.0
    %896 = vmatprep.subr.mxu0 0.0
    %897 = vmatpush1.msra.mxu0 0.0
    %898 = vmatprep.subr.mxu0 0.0
    %899 = vmatpush1.msra.mxu0 0.0
    %900 = vmatprep.subr.mxu0 0.0
    %901 = vmatpush1.msra.mxu0 0.0
    %902 = vmatprep.subr.mxu0 0.0
    %903 = vmatpush1.msra.mxu0 0.0
    %904 = vmatprep.subr.mxu0 0.0
    %905 = vmatpush1.msra.mxu0 0.0
    %906 = vmatprep.subr.mxu0 0.0
    %907 = vmatpush1.msra.mxu0 0.0
    %908 = vmatprep.subr.mxu0 0.0
    %909 = vmatpush1.msra.mxu0 0.0
    %910 = vmatprep.subr.mxu0 0.0
    %911 = vmatpush1.msra.mxu0 0.0
    %912 = vmatprep.subr.mxu0 0.0
    %913 = vmatpush1.msra.mxu0 0.0
    %914 = vmatprep.subr.mxu0 0.0
    %915 = vmatpush1.msra.mxu0 0.0
    %916 = vmatprep.subr.mxu0 0.0
    %917 = vmatpush1.msra.mxu0 0.0
    %918 = vmatprep.subr.mxu0 0.0
    %919 = vmatpush1.msra.mxu0 0.0
    %920 = vmatprep.subr.mxu0 0.0
    %921 = vmatpush1.msra.mxu0 0.0
    %922 = vmatprep.subr.mxu0 0.0
    %923 = vmatpush1.msra.mxu0 0.0
    %924 = vmatprep.subr.mxu0 0.0
    %925 = vmatpush1.msra.mxu0 0.0
    %926 = vmatprep.mubr.f32.mxu0 0.0
    %927 = vmatmul.mubr.f32.gmra.mrb[0].mxu0 %v860
    %v928 = vpop.f32.mrb[0].mxu0
    %v929 = vadd.f32 %v224, %v928
    %v930 = vpop.f32.mrb[0].mxu0
    %931 = vdwg.mxu0
    %932 = vmatprep.subr.mxu0 0.0
    %933 = vmatpush1.msra.mxu0 %v119
    %934 = vmatprep.subr.mxu0 0.0
    %935 = vmatpush1.msra.mxu0 0.0
    %936 = vmatprep.subr.mxu0 0.0
    %937 = vmatpush1.msra.mxu0 0.0
    %938 = vmatprep.subr.mxu0 0.0
    %939 = vmatpush1.msra.mxu0 0.0
    %940 = vmatprep.subr.mxu0 0.0
    %941 = vmatpush1.msra.mxu0 0.0
    %942 = vmatprep.subr.mxu0 0.0
    %943 = vmatpush1.msra.mxu0 0.0
    %944 = vmatprep.subr.mxu0 0.0
    %945 = vmatpush1.msra.mxu0 0.0
    %946 = vmatprep.subr.mxu0 0.0
    %947 = vmatpush1.msra.mxu0 0.0
    %948 = vmatprep.subr.mxu0 0.0
    %949 = vmatpush1.msra.mxu0 0.0
    %950 = vmatprep.subr.mxu0 0.0
    %951 = vmatpush1.msra.mxu0 0.0
    %952 = vmatprep.subr.mxu0 0.0
    %953 = vmatpush1.msra.mxu0 0.0
    %954 = vmatprep.subr.mxu0 0.0
    %955 = vmatpush1.msra.mxu0 0.0
    %956 = vmatprep.subr.mxu0 0.0
    %957 = vmatpush1.msra.mxu0 0.0
    %958 = vmatprep.subr.mxu0 0.0
    %959 = vmatpush1.msra.mxu0 0.0
    %960 = vmatprep.subr.mxu0 0.0
    %961 = vmatpush1.msra.mxu0 0.0
    %962 = vmatprep.subr.mxu0 0.0
    %963 = vmatpush1.msra.mxu0 0.0
    %964 = vmatprep.subr.mxu0 0.0
    %965 = vmatpush1.msra.mxu0 0.0
    %966 = vmatprep.subr.mxu0 0.0
    %967 = vmatpush1.msra.mxu0 0.0
    %968 = vmatprep.subr.mxu0 0.0
    %969 = vmatpush1.msra.mxu0 0.0
    %970 = vmatprep.subr.mxu0 0.0
    %971 = vmatpush1.msra.mxu0 0.0
    %972 = vmatprep.subr.mxu0 0.0
    %973 = vmatpush1.msra.mxu0 0.0
    %974 = vmatprep.subr.mxu0 0.0
    %975 = vmatpush1.msra.mxu0 0.0
    %976 = vmatprep.subr.mxu0 0.0
    %977 = vmatpush1.msra.mxu0 0.0
    %978 = vmatprep.subr.mxu0 0.0
    %979 = vmatpush1.msra.mxu0 0.0
    %980 = vmatprep.subr.mxu0 0.0
    %981 = vmatpush1.msra.mxu0 0.0
    %982 = vmatprep.subr.mxu0 0.0
    %983 = vmatpush1.msra.mxu0 0.0
    %984 = vmatprep.subr.mxu0 0.0
    %985 = vmatpush1.msra.mxu0 0.0
    %986 = vmatprep.subr.mxu0 0.0
    %987 = vmatpush1.msra.mxu0 0.0
    %988 = vmatprep.subr.mxu0 0.0
    %989 = vmatpush1.msra.mxu0 0.0
    %990 = vmatprep.subr.mxu0 0.0
    %991 = vmatpush1.msra.mxu0 0.0
    %992 = vmatprep.subr.mxu0 0.0
    %993 = vmatpush1.msra.mxu0 0.0
    %994 = vmatprep.subr.mxu0 0.0
    %995 = vmatpush1.msra.mxu0 0.0
    %996 = vmatprep.mubr.f32.mxu0 0.0
    %997 = vmatmul.mubr.f32.gmra.mrb[0].mxu0 %v860
    %v998 = vpop.f32.mrb[0].mxu0
    %v999 = vadd.f32 %v129, %v998
    %v1000 = vpop.f32.mrb[0].mxu0
    %1001 = vdwg.mxu0
    %v1002 = vld [vmem:[#allocation2 + $0x6] sm:$0x1]
    %v1003 = vld [vmem:[#allocation2 + $0xe] sm:$0x1]
    %v1004 = vld [vmem:[#allocation2 + $0x16] sm:$0x1]
    %v1005 = vld [vmem:[#allocation2 + $0x1e] sm:$0x1]
    %v1010 = vrot.slane %v1003, 7
    %v1011 = vsel %vm136, %v1010, %v1002
    %v1012 = vrot.slane %v1004, 6
    %v1013 = vsel %vm139, %v1012, %v1011
    %v1014 = vrot.slane %v1005, 5
    %v1015 = vsel %vm142, %v1014, %v1013
    %v1016 = vsel %vm97, %v1015, 0
    %1018 = vmatprep.subr.mxu0 0.0
    %1019 = vmatpush1.msra.mxu0 %v117
    %1020 = vmatprep.subr.mxu0 0.0
    %1021 = vmatpush1.msra.mxu0 0.0
    %1022 = vmatprep.subr.mxu0 0.0
    %1023 = vmatpush1.msra.mxu0 0.0
    %1024 = vmatprep.subr.mxu0 0.0
    %1025 = vmatpush1.msra.mxu0 0.0
    %1026 = vmatprep.subr.mxu0 0.0
    %1027 = vmatpush1.msra.mxu0 0.0
    %1028 = vmatprep.subr.mxu0 0.0
    %1029 = vmatpush1.msra.mxu0 0.0
    %1030 = vmatprep.subr.mxu0 0.0
    %1031 = vmatpush1.msra.mxu0 0.0
    %1032 = vmatprep.subr.mxu0 0.0
    %1033 = vmatpush1.msra.mxu0 0.0
    %1034 = vmatprep.subr.mxu0 0.0
    %1035 = vmatpush1.msra.mxu0 0.0
    %1036 = vmatprep.subr.mxu0 0.0
    %1037 = vmatpush1.msra.mxu0 0.0
    %1038 = vmatprep.subr.mxu0 0.0
    %1039 = vmatpush1.msra.mxu0 0.0
    %1040 = vmatprep.subr.mxu0 0.0
    %1041 = vmatpush1.msra.mxu0 0.0
    %1042 = vmatprep.subr.mxu0 0.0
    %1043 = vmatpush1.msra.mxu0 0.0
    %1044 = vmatprep.subr.mxu0 0.0
    %1045 = vmatpush1.msra.mxu0 0.0
    %1046 = vmatprep.subr.mxu0 0.0
    %1047 = vmatpush1.msra.mxu0 0.0
    %1048 = vmatprep.subr.mxu0 0.0
    %1049 = vmatpush1.msra.mxu0 0.0
    %1050 = vmatprep.subr.mxu0 0.0
    %1051 = vmatpush1.msra.mxu0 0.0
    %1052 = vmatprep.subr.mxu0 0.0
    %1053 = vmatpush1.msra.mxu0 0.0
    %1054 = vmatprep.subr.mxu0 0.0
    %1055 = vmatpush1.msra.mxu0 0.0
    %1056 = vmatprep.subr.mxu0 0.0
    %1057 = vmatpush1.msra.mxu0 0.0
    %1058 = vmatprep.subr.mxu0 0.0
    %1059 = vmatpush1.msra.mxu0 0.0
    %1060 = vmatprep.subr.mxu0 0.0
    %1061 = vmatpush1.msra.mxu0 0.0
    %1062 = vmatprep.subr.mxu0 0.0
    %1063 = vmatpush1.msra.mxu0 0.0
    %1064 = vmatprep.subr.mxu0 0.0
    %1065 = vmatpush1.msra.mxu0 0.0
    %1066 = vmatprep.subr.mxu0 0.0
    %1067 = vmatpush1.msra.mxu0 0.0
    %1068 = vmatprep.subr.mxu0 0.0
    %1069 = vmatpush1.msra.mxu0 0.0
    %1070 = vmatprep.subr.mxu0 0.0
    %1071 = vmatpush1.msra.mxu0 0.0
    %1072 = vmatprep.subr.mxu0 0.0
    %1073 = vmatpush1.msra.mxu0 0.0
    %1074 = vmatprep.subr.mxu0 0.0
    %1075 = vmatpush1.msra.mxu0 0.0
    %1076 = vmatprep.subr.mxu0 0.0
    %1077 = vmatpush1.msra.mxu0 0.0
    %1078 = vmatprep.subr.mxu0 0.0
    %1079 = vmatpush1.msra.mxu0 0.0
    %1080 = vmatprep.subr.mxu0 0.0
    %1081 = vmatpush1.msra.mxu0 0.0
    %1082 = vmatprep.mubr.f32.mxu0 0.0
    %1083 = vmatmul.mubr.f32.gmra.mrb[0].mxu0 %v1016
    %v1084 = vpop.f32.mrb[0].mxu0
    %v1085 = vadd.f32 %v224, %v1084
    %v1086 = vpop.f32.mrb[0].mxu0
    %1087 = vdwg.mxu0
    %1088 = vmatprep.subr.mxu0 0.0
    %1089 = vmatpush1.msra.mxu0 %v119
    %1090 = vmatprep.subr.mxu0 0.0
    %1091 = vmatpush1.msra.mxu0 0.0
    %1092 = vmatprep.subr.mxu0 0.0
    %1093 = vmatpush1.msra.mxu0 0.0
    %1094 = vmatprep.subr.mxu0 0.0
    %1095 = vmatpush1.msra.mxu0 0.0
    %1096 = vmatprep.subr.mxu0 0.0
    %1097 = vmatpush1.msra.mxu0 0.0
    %1098 = vmatprep.subr.mxu0 0.0
    %1099 = vmatpush1.msra.mxu0 0.0
    %1100 = vmatprep.subr.mxu0 0.0
    %1101 = vmatpush1.msra.mxu0 0.0
    %1102 = vmatprep.subr.mxu0 0.0
    %1103 = vmatpush1.msra.mxu0 0.0
    %1104 = vmatprep.subr.mxu0 0.0
    %1105 = vmatpush1.msra.mxu0 0.0
    %1106 = vmatprep.subr.mxu0 0.0
    %1107 = vmatpush1.msra.mxu0 0.0
    %1108 = vmatprep.subr.mxu0 0.0
    %1109 = vmatpush1.msra.mxu0 0.0
    %1110 = vmatprep.subr.mxu0 0.0
    %1111 = vmatpush1.msra.mxu0 0.0
    %1112 = vmatprep.subr.mxu0 0.0
    %1113 = vmatpush1.msra.mxu0 0.0
    %1114 = vmatprep.subr.mxu0 0.0
    %1115 = vmatpush1.msra.mxu0 0.0
    %1116 = vmatprep.subr.mxu0 0.0
    %1117 = vmatpush1.msra.mxu0 0.0
    %1118 = vmatprep.subr.mxu0 0.0
    %1119 = vmatpush1.msra.mxu0 0.0
    %1120 = vmatprep.subr.mxu0 0.0
    %1121 = vmatpush1.msra.mxu0 0.0
    %1122 = vmatprep.subr.mxu0 0.0
    %1123 = vmatpush1.msra.mxu0 0.0
    %1124 = vmatprep.subr.mxu0 0.0
    %1125 = vmatpush1.msra.mxu0 0.0
    %1126 = vmatprep.subr.mxu0 0.0
    %1127 = vmatpush1.msra.mxu0 0.0
    %1128 = vmatprep.subr.mxu0 0.0
    %1129 = vmatpush1.msra.mxu0 0.0
    %1130 = vmatprep.subr.mxu0 0.0
    %1131 = vmatpush1.msra.mxu0 0.0
    %1132 = vmatprep.subr.mxu0 0.0
    %1133 = vmatpush1.msra.mxu0 0.0
    %1134 = vmatprep.subr.mxu0 0.0
    %1135 = vmatpush1.msra.mxu0 0.0
    %1136 = vmatprep.subr.mxu0 0.0
    %1137 = vmatpush1.msra.mxu0 0.0
    %1138 = vmatprep.subr.mxu0 0.0
    %1139 = vmatpush1.msra.mxu0 0.0
    %1140 = vmatprep.subr.mxu0 0.0
    %1141 = vmatpush1.msra.mxu0 0.0
    %1142 = vmatprep.subr.mxu0 0.0
    %1143 = vmatpush1.msra.mxu0 0.0
    %1144 = vmatprep.subr.mxu0 0.0
    %1145 = vmatpush1.msra.mxu0 0.0
    %1146 = vmatprep.subr.mxu0 0.0
    %1147 = vmatpush1.msra.mxu0 0.0
    %1148 = vmatprep.subr.mxu0 0.0
    %1149 = vmatpush1.msra.mxu0 0.0
    %1150 = vmatprep.subr.mxu0 0.0
    %1151 = vmatpush1.msra.mxu0 0.0
    %1152 = vmatprep.mubr.f32.mxu0 0.0
    %1153 = vmatmul.mubr.f32.gmra.mrb[0].mxu0 %v1016
    %v1154 = vpop.f32.mrb[0].mxu0
    %v1155 = vadd.f32 %v129, %v1154
    %v1156 = vpop.f32.mrb[0].mxu0
    %1157 = vdwg.mxu0
    %v1158 = vld [vmem:[#allocation2 + $0x7] sm:$0x1]
    %v1159 = vld [vmem:[#allocation2 + $0xf] sm:$0x1]
    %v1160 = vld [vmem:[#allocation2 + $0x17] sm:$0x1]
    %v1161 = vld [vmem:[#allocation2 + $0x1f] sm:$0x1]
    %v1166 = vrot.slane %v1159, 7
    %v1167 = vsel %vm136, %v1166, %v1158
    %v1168 = vrot.slane %v1160, 6
    %v1169 = vsel %vm139, %v1168, %v1167
    %v1170 = vrot.slane %v1161, 5
    %v1171 = vsel %vm142, %v1170, %v1169
    %v1172 = vsel %vm97, %v1171, 0
    %1174 = vmatprep.subr.mxu0 0.0
    %1175 = vmatpush1.msra.mxu0 %v117
    %1176 = vmatprep.subr.mxu0 0.0
    %1177 = vmatpush1.msra.mxu0 0.0
    %1178 = vmatprep.subr.mxu0 0.0
    %1179 = vmatpush1.msra.mxu0 0.0
    %1180 = vmatprep.subr.mxu0 0.0
    %1181 = vmatpush1.msra.mxu0 0.0
    %1182 = vmatprep.subr.mxu0 0.0
    %1183 = vmatpush1.msra.mxu0 0.0
    %1184 = vmatprep.subr.mxu0 0.0
    %1185 = vmatpush1.msra.mxu0 0.0
    %1186 = vmatprep.subr.mxu0 0.0
    %1187 = vmatpush1.msra.mxu0 0.0
    %1188 = vmatprep.subr.mxu0 0.0
    %1189 = vmatpush1.msra.mxu0 0.0
    %1190 = vmatprep.subr.mxu0 0.0
    %1191 = vmatpush1.msra.mxu0 0.0
    %1192 = vmatprep.subr.mxu0 0.0
    %1193 = vmatpush1.msra.mxu0 0.0
    %1194 = vmatprep.subr.mxu0 0.0
    %1195 = vmatpush1.msra.mxu0 0.0
    %1196 = vmatprep.subr.mxu0 0.0
    %1197 = vmatpush1.msra.mxu0 0.0
    %1198 = vmatprep.subr.mxu0 0.0
    %1199 = vmatpush1.msra.mxu0 0.0
    %1200 = vmatprep.subr.mxu0 0.0
    %1201 = vmatpush1.msra.mxu0 0.0
    %1202 = vmatprep.subr.mxu0 0.0
    %1203 = vmatpush1.msra.mxu0 0.0
    %1204 = vmatprep.subr.mxu0 0.0
    %1205 = vmatpush1.msra.mxu0 0.0
    %1206 = vmatprep.subr.mxu0 0.0
    %1207 = vmatpush1.msra.mxu0 0.0
    %1208 = vmatprep.subr.mxu0 0.0
    %1209 = vmatpush1.msra.mxu0 0.0
    %1210 = vmatprep.subr.mxu0 0.0
    %1211 = vmatpush1.msra.mxu0 0.0
    %1212 = vmatprep.subr.mxu0 0.0
    %1213 = vmatpush1.msra.mxu0 0.0
    %1214 = vmatprep.subr.mxu0 0.0
    %1215 = vmatpush1.msra.mxu0 0.0
    %1216 = vmatprep.subr.mxu0 0.0
    %1217 = vmatpush1.msra.mxu0 0.0
    %1218 = vmatprep.subr.mxu0 0.0
    %1219 = vmatpush1.msra.mxu0 0.0
    %1220 = vmatprep.subr.mxu0 0.0
    %1221 = vmatpush1.msra.mxu0 0.0
    %1222 = vmatprep.subr.mxu0 0.0
    %1223 = vmatpush1.msra.mxu0 0.0
    %1224 = vmatprep.subr.mxu0 0.0
    %1225 = vmatpush1.msra.mxu0 0.0
    %1226 = vmatprep.subr.mxu0 0.0
    %1227 = vmatpush1.msra.mxu0 0.0
    %1228 = vmatprep.subr.mxu0 0.0
    %1229 = vmatpush1.msra.mxu0 0.0
    %1230 = vmatprep.subr.mxu0 0.0
    %1231 = vmatpush1.msra.mxu0 0.0
    %1232 = vmatprep.subr.mxu0 0.0
    %1233 = vmatpush1.msra.mxu0 0.0
    %1234 = vmatprep.subr.mxu0 0.0
    %1235 = vmatpush1.msra.mxu0 0.0
    %1236 = vmatprep.subr.mxu0 0.0
    %1237 = vmatpush1.msra.mxu0 0.0
    %1238 = vmatprep.mubr.f32.mxu0 0.0
    %1239 = vmatmul.mubr.f32.gmra.mrb[0].mxu0 %v1172
    %v1240 = vpop.f32.mrb[0].mxu0
    %v1241 = vadd.f32 %v224, %v1240
    %v1242 = vpop.f32.mrb[0].mxu0
    %1243 = vdwg.mxu0
    %1244 = vmatprep.subr.mxu0 0.0
    %1245 = vmatpush1.msra.mxu0 %v119
    %1246 = vmatprep.subr.mxu0 0.0
    %1247 = vmatpush1.msra.mxu0 0.0
    %1248 = vmatprep.subr.mxu0 0.0
    %1249 = vmatpush1.msra.mxu0 0.0
    %1250 = vmatprep.subr.mxu0 0.0
    %1251 = vmatpush1.msra.mxu0 0.0
    %1252 = vmatprep.subr.mxu0 0.0
    %1253 = vmatpush1.msra.mxu0 0.0
    %1254 = vmatprep.subr.mxu0 0.0
    %1255 = vmatpush1.msra.mxu0 0.0
    %1256 = vmatprep.subr.mxu0 0.0
    %1257 = vmatpush1.msra.mxu0 0.0
    %1258 = vmatprep.subr.mxu0 0.0
    %1259 = vmatpush1.msra.mxu0 0.0
    %1260 = vmatprep.subr.mxu0 0.0
    %1261 = vmatpush1.msra.mxu0 0.0
    %1262 = vmatprep.subr.mxu0 0.0
    %1263 = vmatpush1.msra.mxu0 0.0
    %1264 = vmatprep.subr.mxu0 0.0
    %1265 = vmatpush1.msra.mxu0 0.0
    %1266 = vmatprep.subr.mxu0 0.0
    %1267 = vmatpush1.msra.mxu0 0.0
    %1268 = vmatprep.subr.mxu0 0.0
    %1269 = vmatpush1.msra.mxu0 0.0
    %1270 = vmatprep.subr.mxu0 0.0
    %1271 = vmatpush1.msra.mxu0 0.0
    %1272 = vmatprep.subr.mxu0 0.0
    %1273 = vmatpush1.msra.mxu0 0.0
    %1274 = vmatprep.subr.mxu0 0.0
    %1275 = vmatpush1.msra.mxu0 0.0
    %1276 = vmatprep.subr.mxu0 0.0
    %1277 = vmatpush1.msra.mxu0 0.0
    %1278 = vmatprep.subr.mxu0 0.0
    %1279 = vmatpush1.msra.mxu0 0.0
    %1280 = vmatprep.subr.mxu0 0.0
    %1281 = vmatpush1.msra.mxu0 0.0
    %1282 = vmatprep.subr.mxu0 0.0
    %1283 = vmatpush1.msra.mxu0 0.0
    %1284 = vmatprep.subr.mxu0 0.0
    %1285 = vmatpush1.msra.mxu0 0.0
    %1286 = vmatprep.subr.mxu0 0.0
    %1287 = vmatpush1.msra.mxu0 0.0
    %1288 = vmatprep.subr.mxu0 0.0
    %1289 = vmatpush1.msra.mxu0 0.0
    %1290 = vmatprep.subr.mxu0 0.0
    %1291 = vmatpush1.msra.mxu0 0.0
    %1292 = vmatprep.subr.mxu0 0.0
    %1293 = vmatpush1.msra.mxu0 0.0
    %1294 = vmatprep.subr.mxu0 0.0
    %1295 = vmatpush1.msra.mxu0 0.0
    %1296 = vmatprep.subr.mxu0 0.0
    %1297 = vmatpush1.msra.mxu0 0.0
    %1298 = vmatprep.subr.mxu0 0.0
    %1299 = vmatpush1.msra.mxu0 0.0
    %1300 = vmatprep.subr.mxu0 0.0
    %1301 = vmatpush1.msra.mxu0 0.0
    %1302 = vmatprep.subr.mxu0 0.0
    %1303 = vmatpush1.msra.mxu0 0.0
    %1304 = vmatprep.subr.mxu0 0.0
    %1305 = vmatpush1.msra.mxu0 0.0
    %1306 = vmatprep.subr.mxu0 0.0
    %1307 = vmatpush1.msra.mxu0 0.0
    %1308 = vmatprep.mubr.f32.mxu0 0.0
    %1309 = vmatmul.mubr.f32.gmra.mrb[0].mxu0 %v1172
    %v1310 = vpop.f32.mrb[0].mxu0
    %v1311 = vadd.f32 %v129, %v1310
    %v1312 = vpop.f32.mrb[0].mxu0
    %1313 = vdwg.mxu0
    %v1314 = vld [vmem:[#allocation9] sm:$0xff]
    %v1315 = vld [vmem:[#allocation9 + $0x8] sm:$0xff]
    %v1316 = vld [vmem:[#allocation9 + $0x10] sm:$0xff]
    %v1317 = vld [vmem:[#allocation9 + $0x18] sm:$0xff]
    %v1318 = vld [vmem:[#allocation10] sm:$0xff]
    %v1319 = vld [vmem:[#allocation10 + $0x8] sm:$0xff]
    %v1320 = vld [vmem:[#allocation10 + $0x10] sm:$0xff]
    %v1321 = vld [vmem:[#allocation10 + $0x18] sm:$0xff]
    %v1322 = vtanh.pop %v213
    %vm1323 = vcmask 261120
    %v1325 = vsel %vm1323, %v1322, 0
    %1327 = vmatprep.subr.mxu0 0.0
    %1328 = vmatpush1.msra.mxu0 %v1314
    %1329 = vmatprep.subr.mxu0 0.0
    %1330 = vmatpush1.msra.mxu0 %v1315
    %1331 = vmatprep.subr.mxu0 0.0
    %1332 = vmatpush1.msra.mxu0 %v1316
    %1333 = vmatprep.subr.mxu0 0.0
    %1334 = vmatpush1.msra.mxu0 %v1317
    %1335 = vmatprep.subr.mxu0 0.0
    %1336 = vmatpush1.msra.mxu0 0.0
    %1337 = vmatprep.subr.mxu0 0.0
    %1338 = vmatpush1.msra.mxu0 0.0
    %1339 = vmatprep.subr.mxu0 0.0
    %1340 = vmatpush1.msra.mxu0 0.0
    %1341 = vmatprep.subr.mxu0 0.0
    %1342 = vmatpush1.msra.mxu0 0.0
    %1343 = vmatprep.subr.mxu0 0.0
    %1344 = vmatpush1.msra.mxu0 0.0
    %1345 = vmatprep.subr.mxu0 0.0
    %1346 = vmatpush1.msra.mxu0 0.0
    %1347 = vmatprep.subr.mxu0 0.0
    %1348 = vmatpush1.msra.mxu0 0.0
    %1349 = vmatprep.subr.mxu0 0.0
    %1350 = vmatpush1.msra.mxu0 0.0
    %1351 = vmatprep.subr.mxu0 0.0
    %1352 = vmatpush1.msra.mxu0 0.0
    %1353 = vmatprep.subr.mxu0 0.0
    %1354 = vmatpush1.msra.mxu0 0.0
    %1355 = vmatprep.subr.mxu0 0.0
    %1356 = vmatpush1.msra.mxu0 0.0
    %1357 = vmatprep.subr.mxu0 0.0
    %1358 = vmatpush1.msra.mxu0 0.0
    %1359 = vmatprep.subr.mxu0 0.0
    %1360 = vmatpush1.msra.mxu0 0.0
    %1361 = vmatprep.subr.mxu0 0.0
    %1362 = vmatpush1.msra.mxu0 0.0
    %1363 = vmatprep.subr.mxu0 0.0
    %1364 = vmatpush1.msra.mxu0 0.0
    %1365 = vmatprep.subr.mxu0 0.0
    %1366 = vmatpush1.msra.mxu0 0.0
    %1367 = vmatprep.subr.mxu0 0.0
    %1368 = vmatpush1.msra.mxu0 0.0
    %1369 = vmatprep.subr.mxu0 0.0
    %1370 = vmatpush1.msra.mxu0 0.0
    %1371 = vmatprep.subr.mxu0 0.0
    %1372 = vmatpush1.msra.mxu0 0.0
    %1373 = vmatprep.subr.mxu0 0.0
    %1374 = vmatpush1.msra.mxu0 0.0
    %1375 = vmatprep.subr.mxu0 0.0
    %1376 = vmatpush1.msra.mxu0 0.0
    %1377 = vmatprep.subr.mxu0 0.0
    %1378 = vmatpush1.msra.mxu0 0.0
    %1379 = vmatprep.subr.mxu0 0.0
    %1380 = vmatpush1.msra.mxu0 0.0
    %1381 = vmatprep.subr.mxu0 0.0
    %1382 = vmatpush1.msra.mxu0 0.0
    %1383 = vmatprep.subr.mxu0 0.0
    %1384 = vmatpush1.msra.mxu0 0.0
    %1385 = vmatprep.subr.mxu0 0.0
    %1386 = vmatpush1.msra.mxu0 0.0
    %1387 = vmatprep.subr.mxu0 0.0
    %1388 = vmatpush1.msra.mxu0 0.0
    %1389 = vmatprep.subr.mxu0 0.0
    %1390 = vmatpush1.msra.mxu0 0.0
    %1391 = vmatprep.mubr.f32.mxu0 0.0
    %1392 = vmatmul.mubr.f32.gmra.mrb[0].mxu0 %v1325
    %v1393 = vpop.f32.mrb[0].mxu0
    %v1394 = vadd.f32 %v305, %v1393
    %v1395 = vpop.f32.mrb[0].mxu0
    %1396 = vdwg.mxu0
    %v1397 = vmul.f32 %v1394, 0.5
    %v1398 = vtanh.pop %v1397
    %v1399 = vmul.f32 %v1398, 0.5
    %v1400 = vadd.f32 %v1399, 0.5
    %v1401 = vmul.f32 %v1400, %v1322
    %v1403 = vsel %vm1323, %v1401, 0
    %1405 = vmatprep.subr.mxu0 0.0
    %1406 = vmatpush1.msra.mxu0 %v1318
    %1407 = vmatprep.subr.mxu0 0.0
    %1408 = vmatpush1.msra.mxu0 %v1319
    %1409 = vmatprep.subr.mxu0 0.0
    %1410 = vmatpush1.msra.mxu0 %v1320
    %1411 = vmatprep.subr.mxu0 0.0
    %1412 = vmatpush1.msra.mxu0 %v1321
    %1413 = vmatprep.subr.mxu0 0.0
    %1414 = vmatpush1.msra.mxu0 0.0
    %1415 = vmatprep.subr.mxu0 0.0
    %1416 = vmatpush1.msra.mxu0 0.0
    %1417 = vmatprep.subr.mxu0 0.0
    %1418 = vmatpush1.msra.mxu0 0.0
    %1419 = vmatprep.subr.mxu0 0.0
    %1420 = vmatpush1.msra.mxu0 0.0
    %1421 = vmatprep.subr.mxu0 0.0
    %1422 = vmatpush1.msra.mxu0 0.0
    %1423 = vmatprep.subr.mxu0 0.0
    %1424 = vmatpush1.msra.mxu0 0.0
    %1425 = vmatprep.subr.mxu0 0.0
    %1426 = vmatpush1.msra.mxu0 0.0
    %1427 = vmatprep.subr.mxu0 0.0
    %1428 = vmatpush1.msra.mxu0 0.0
    %1429 = vmatprep.subr.mxu0 0.0
    %1430 = vmatpush1.msra.mxu0 0.0
    %1431 = vmatprep.subr.mxu0 0.0
    %1432 = vmatpush1.msra.mxu0 0.0
    %1433 = vmatprep.subr.mxu0 0.0
    %1434 = vmatpush1.msra.mxu0 0.0
    %1435 = vmatprep.subr.mxu0 0.0
    %1436 = vmatpush1.msra.mxu0 0.0
    %1437 = vmatprep.subr.mxu0 0.0
    %1438 = vmatpush1.msra.mxu0 0.0
    %1439 = vmatprep.subr.mxu0 0.0
    %1440 = vmatpush1.msra.mxu0 0.0
    %1441 = vmatprep.subr.mxu0 0.0
    %1442 = vmatpush1.msra.mxu0 0.0
    %1443 = vmatprep.subr.mxu0 0.0
    %1444 = vmatpush1.msra.mxu0 0.0
    %1445 = vmatprep.subr.mxu0 0.0
    %1446 = vmatpush1.msra.mxu0 0.0
    %1447 = vmatprep.subr.mxu0 0.0
    %1448 = vmatpush1.msra.mxu0 0.0
    %1449 = vmatprep.subr.mxu0 0.0
    %1450 = vmatpush1.msra.mxu0 0.0
    %1451 = vmatprep.subr.mxu0 0.0
    %1452 = vmatpush1.msra.mxu0 0.0
    %1453 = vmatprep.subr.mxu0 0.0
    %1454 = vmatpush1.msra.mxu0 0.0
    %1455 = vmatprep.subr.mxu0 0.0
    %1456 = vmatpush1.msra.mxu0 0.0
    %1457 = vmatprep.subr.mxu0 0.0
    %1458 = vmatpush1.msra.mxu0 0.0
    %1459 = vmatprep.subr.mxu0 0.0
    %1460 = vmatpush1.msra.mxu0 0.0
    %1461 = vmatprep.subr.mxu0 0.0
    %1462 = vmatpush1.msra.mxu0 0.0
    %1463 = vmatprep.subr.mxu0 0.0
    %1464 = vmatpush1.msra.mxu0 0.0
    %1465 = vmatprep.subr.mxu0 0.0
    %1466 = vmatpush1.msra.mxu0 0.0
    %1467 = vmatprep.subr.mxu0 0.0
    %1468 = vmatpush1.msra.mxu0 0.0
    %1469 = vmatprep.mubr.f32.mxu0 0.0
    %1470 = vmatmul.mubr.f32.gmra.mrb[0].mxu0 %v1403
    %v1471 = vpop.f32.mrb[0].mxu0
    %v1472 = vadd.f32 %v375, %v1471
    %v1473 = vpop.f32.mrb[0].mxu0
    %1474 = vdwg.mxu0
    %v1475 = vtanh.pop %v1472
    %v1476 = vsub.f32 %v1475, %v1322
    %1478 = vrot.lane.b32.xlu0 %v1476, 32
    %v1479 = vpop.permute.xlu0 %1478
    %v1481 = vmul.f32 %v1400, %v1479
    %1483 = vrot.lane.b32.xlu0 %v1481, 96
    %v1484 = vpop.permute.xlu0 %1483
    %v1486 = vadd.f32 %v1322, %v1484
    %v1488 = vsel %vm1323, %v1486, 0
    %1490 = vmatprep.subr.mxu0 0.0
    %1491 = vmatpush1.msra.mxu0 %v1314
    %1492 = vmatprep.subr.mxu0 0.0
    %1493 = vmatpush1.msra.mxu0 %v1315
    %1494 = vmatprep.subr.mxu0 0.0
    %1495 = vmatpush1.msra.mxu0 %v1316
    %1496 = vmatprep.subr.mxu0 0.0
    %1497 = vmatpush1.msra.mxu0 %v1317
    %1498 = vmatprep.subr.mxu0 0.0
    %1499 = vmatpush1.msra.mxu0 0.0
    %1500 = vmatprep.subr.mxu0 0.0
    %1501 = vmatpush1.msra.mxu0 0.0
    %1502 = vmatprep.subr.mxu0 0.0
    %1503 = vmatpush1.msra.mxu0 0.0
    %1504 = vmatprep.subr.mxu0 0.0
    %1505 = vmatpush1.msra.mxu0 0.0
    %1506 = vmatprep.subr.mxu0 0.0
    %1507 = vmatpush1.msra.mxu0 0.0
    %1508 = vmatprep.subr.mxu0 0.0
    %1509 = vmatpush1.msra.mxu0 0.0
    %1510 = vmatprep.subr.mxu0 0.0
    %1511 = vmatpush1.msra.mxu0 0.0
    %1512 = vmatprep.subr.mxu0 0.0
    %1513 = vmatpush1.msra.mxu0 0.0
    %1514 = vmatprep.subr.mxu0 0.0
    %1515 = vmatpush1.msra.mxu0 0.0
    %1516 = vmatprep.subr.mxu0 0.0
    %1517 = vmatpush1.msra.mxu0 0.0
    %1518 = vmatprep.subr.mxu0 0.0
    %1519 = vmatpush1.msra.mxu0 0.0
    %1520 = vmatprep.subr.mxu0 0.0
    %1521 = vmatpush1.msra.mxu0 0.0
    %1522 = vmatprep.subr.mxu0 0.0
    %1523 = vmatpush1.msra.mxu0 0.0
    %1524 = vmatprep.subr.mxu0 0.0
    %1525 = vmatpush1.msra.mxu0 0.0
    %1526 = vmatprep.subr.mxu0 0.0
    %1527 = vmatpush1.msra.mxu0 0.0
    %1528 = vmatprep.subr.mxu0 0.0
    %1529 = vmatpush1.msra.mxu0 0.0
    %1530 = vmatprep.subr.mxu0 0.0
    %1531 = vmatpush1.msra.mxu0 0.0
    %1532 = vmatprep.subr.mxu0 0.0
    %1533 = vmatpush1.msra.mxu0 0.0
    %1534 = vmatprep.subr.mxu0 0.0
    %1535 = vmatpush1.msra.mxu0 0.0
    %1536 = vmatprep.subr.mxu0 0.0
    %1537 = vmatpush1.msra.mxu0 0.0
    %1538 = vmatprep.subr.mxu0 0.0
    %1539 = vmatpush1.msra.mxu0 0.0
    %1540 = vmatprep.subr.mxu0 0.0
    %1541 = vmatpush1.msra.mxu0 0.0
    %1542 = vmatprep.subr.mxu0 0.0
    %1543 = vmatpush1.msra.mxu0 0.0
    %1544 = vmatprep.subr.mxu0 0.0
    %1545 = vmatpush1.msra.mxu0 0.0
    %1546 = vmatprep.subr.mxu0 0.0
    %1547 = vmatpush1.msra.mxu0 0.0
    %1548 = vmatprep.subr.mxu0 0.0
    %1549 = vmatpush1.msra.mxu0 0.0
    %1550 = vmatprep.subr.mxu0 0.0
    %1551 = vmatpush1.msra.mxu0 0.0
    %1552 = vmatprep.subr.mxu0 0.0
    %1553 = vmatpush1.msra.mxu0 0.0
    %1554 = vmatprep.mubr.f32.mxu0 0.0
    %1555 = vmatmul.mubr.f32.gmra.mrb[0].mxu0 %v1488
    %v1556 = vpop.f32.mrb[0].mxu0
    %v1557 = vadd.f32 %v461, %v1556
    %v1558 = vpop.f32.mrb[0].mxu0
    %1559 = vdwg.mxu0
    %v1560 = vmul.f32 %v1557, 0.5
    %v1561 = vtanh.pop %v1560
    %v1562 = vmul.f32 %v1561, 0.5
    %v1563 = vadd.f32 %v1562, 0.5
    %v1564 = vmul.f32 %v1563, %v1486
    %v1566 = vsel %vm1323, %v1564, 0
    %1568 = vmatprep.subr.mxu0 0.0
    %1569 = vmatpush1.msra.mxu0 %v1318
    %1570 = vmatprep.subr.mxu0 0.0
    %1571 = vmatpush1.msra.mxu0 %v1319
    %1572 = vmatprep.subr.mxu0 0.0
    %1573 = vmatpush1.msra.mxu0 %v1320
    %1574 = vmatprep.subr.mxu0 0.0
    %1575 = vmatpush1.msra.mxu0 %v1321
    %1576 = vmatprep.subr.mxu0 0.0
    %1577 = vmatpush1.msra.mxu0 0.0
    %1578 = vmatprep.subr.mxu0 0.0
    %1579 = vmatpush1.msra.mxu0 0.0
    %1580 = vmatprep.subr.mxu0 0.0
    %1581 = vmatpush1.msra.mxu0 0.0
    %1582 = vmatprep.subr.mxu0 0.0
    %1583 = vmatpush1.msra.mxu0 0.0
    %1584 = vmatprep.subr.mxu0 0.0
    %1585 = vmatpush1.msra.mxu0 0.0
    %1586 = vmatprep.subr.mxu0 0.0
    %1587 = vmatpush1.msra.mxu0 0.0
    %1588 = vmatprep.subr.mxu0 0.0
    %1589 = vmatpush1.msra.mxu0 0.0
    %1590 = vmatprep.subr.mxu0 0.0
    %1591 = vmatpush1.msra.mxu0 0.0
    %1592 = vmatprep.subr.mxu0 0.0
    %1593 = vmatpush1.msra.mxu0 0.0
    %1594 = vmatprep.subr.mxu0 0.0
    %1595 = vmatpush1.msra.mxu0 0.0
    %1596 = vmatprep.subr.mxu0 0.0
    %1597 = vmatpush1.msra.mxu0 0.0
    %1598 = vmatprep.subr.mxu0 0.0
    %1599 = vmatpush1.msra.mxu0 0.0
    %1600 = vmatprep.subr.mxu0 0.0
    %1601 = vmatpush1.msra.mxu0 0.0
    %1602 = vmatprep.subr.mxu0 0.0
    %1603 = vmatpush1.msra.mxu0 0.0
    %1604 = vmatprep.subr.mxu0 0.0
    %1605 = vmatpush1.msra.mxu0 0.0
    %1606 = vmatprep.subr.mxu0 0.0
    %1607 = vmatpush1.msra.mxu0 0.0
    %1608 = vmatprep.subr.mxu0 0.0
    %1609 = vmatpush1.msra.mxu0 0.0
    %1610 = vmatprep.subr.mxu0 0.0
    %1611 = vmatpush1.msra.mxu0 0.0
    %1612 = vmatprep.subr.mxu0 0.0
    %1613 = vmatpush1.msra.mxu0 0.0
    %1614 = vmatprep.subr.mxu0 0.0
    %1615 = vmatpush1.msra.mxu0 0.0
    %1616 = vmatprep.subr.mxu0 0.0
    %1617 = vmatpush1.msra.mxu0 0.0
    %1618 = vmatprep.subr.mxu0 0.0
    %1619 = vmatpush1.msra.mxu0 0.0
    %1620 = vmatprep.subr.mxu0 0.0
    %1621 = vmatpush1.msra.mxu0 0.0
    %1622 = vmatprep.subr.mxu0 0.0
    %1623 = vmatpush1.msra.mxu0 0.0
    %1624 = vmatprep.subr.mxu0 0.0
    %1625 = vmatpush1.msra.mxu0 0.0
    %1626 = vmatprep.subr.mxu0 0.0
    %1627 = vmatpush1.msra.mxu0 0.0
    %1628 = vmatprep.subr.mxu0 0.0
    %1629 = vmatpush1.msra.mxu0 0.0
    %1630 = vmatprep.subr.mxu0 0.0
    %1631 = vmatpush1.msra.mxu0 0.0
    %1632 = vmatprep.mubr.f32.mxu0 0.0
    %1633 = vmatmul.mubr.f32.gmra.mrb[0].mxu0 %v1566
    %v1634 = vpop.f32.mrb[0].mxu0
    %v1635 = vadd.f32 %v531, %v1634
    %v1636 = vpop.f32.mrb[0].mxu0
    %1637 = vdwg.mxu0
    %v1638 = vtanh.pop %v1635
    %v1639 = vsub.f32 %v1638, %v1486
    %1641 = vrot.lane.b32.xlu0 %v1639, 32
    %v1642 = vpop.permute.xlu0 %1641
    %v1644 = vmul.f32 %v1563, %v1642
    %1646 = vrot.lane.b32.xlu0 %v1644, 96
    %v1647 = vpop.permute.xlu0 %1646
    %v1649 = vadd.f32 %v1486, %v1647
    %v1651 = vsel %vm1323, %v1649, 0
    %1653 = vmatprep.subr.mxu0 0.0
    %1654 = vmatpush1.msra.mxu0 %v1314
    %1655 = vmatprep.subr.mxu0 0.0
    %1656 = vmatpush1.msra.mxu0 %v1315
    %1657 = vmatprep.subr.mxu0 0.0
    %1658 = vmatpush1.msra.mxu0 %v1316
    %1659 = vmatprep.subr.mxu0 0.0
    %1660 = vmatpush1.msra.mxu0 %v1317
    %1661 = vmatprep.subr.mxu0 0.0
    %1662 = vmatpush1.msra.mxu0 0.0
    %1663 = vmatprep.subr.mxu0 0.0
    %1664 = vmatpush1.msra.mxu0 0.0
    %1665 = vmatprep.subr.mxu0 0.0
    %1666 = vmatpush1.msra.mxu0 0.0
    %1667 = vmatprep.subr.mxu0 0.0
    %1668 = vmatpush1.msra.mxu0 0.0
    %1669 = vmatprep.subr.mxu0 0.0
    %1670 = vmatpush1.msra.mxu0 0.0
    %1671 = vmatprep.subr.mxu0 0.0
    %1672 = vmatpush1.msra.mxu0 0.0
    %1673 = vmatprep.subr.mxu0 0.0
    %1674 = vmatpush1.msra.mxu0 0.0
    %1675 = vmatprep.subr.mxu0 0.0
    %1676 = vmatpush1.msra.mxu0 0.0
    %1677 = vmatprep.subr.mxu0 0.0
    %1678 = vmatpush1.msra.mxu0 0.0
    %1679 = vmatprep.subr.mxu0 0.0
    %1680 = vmatpush1.msra.mxu0 0.0
    %1681 = vmatprep.subr.mxu0 0.0
    %1682 = vmatpush1.msra.mxu0 0.0
    %1683 = vmatprep.subr.mxu0 0.0
    %1684 = vmatpush1.msra.mxu0 0.0
    %1685 = vmatprep.subr.mxu0 0.0
    %1686 = vmatpush1.msra.mxu0 0.0
    %1687 = vmatprep.subr.mxu0 0.0
    %1688 = vmatpush1.msra.mxu0 0.0
    %1689 = vmatprep.subr.mxu0 0.0
    %1690 = vmatpush1.msra.mxu0 0.0
    %1691 = vmatprep.subr.mxu0 0.0
    %1692 = vmatpush1.msra.mxu0 0.0
    %1693 = vmatprep.subr.mxu0 0.0
    %1694 = vmatpush1.msra.mxu0 0.0
    %1695 = vmatprep.subr.mxu0 0.0
    %1696 = vmatpush1.msra.mxu0 0.0
    %1697 = vmatprep.subr.mxu0 0.0
    %1698 = vmatpush1.msra.mxu0 0.0
    %1699 = vmatprep.subr.mxu0 0.0
    %1700 = vmatpush1.msra.mxu0 0.0
    %1701 = vmatprep.subr.mxu0 0.0
    %1702 = vmatpush1.msra.mxu0 0.0
    %1703 = vmatprep.subr.mxu0 0.0
    %1704 = vmatpush1.msra.mxu0 0.0
    %1705 = vmatprep.subr.mxu0 0.0
    %1706 = vmatpush1.msra.mxu0 0.0
    %1707 = vmatprep.subr.mxu0 0.0
    %1708 = vmatpush1.msra.mxu0 0.0
    %1709 = vmatprep.subr.mxu0 0.0
    %1710 = vmatpush1.msra.mxu0 0.0
    %1711 = vmatprep.subr.mxu0 0.0
    %1712 = vmatpush1.msra.mxu0 0.0
    %1713 = vmatprep.subr.mxu0 0.0
    %1714 = vmatpush1.msra.mxu0 0.0
    %1715 = vmatprep.subr.mxu0 0.0
    %1716 = vmatpush1.msra.mxu0 0.0
    %1717 = vmatprep.mubr.f32.mxu0 0.0
    %1718 = vmatmul.mubr.f32.gmra.mrb[0].mxu0 %v1651
    %v1719 = vpop.f32.mrb[0].mxu0
    %v1720 = vadd.f32 %v617, %v1719
    %v1721 = vpop.f32.mrb[0].mxu0
    %1722 = vdwg.mxu0
    %v1723 = vmul.f32 %v1720, 0.5
    %v1724 = vtanh.pop %v1723
    %v1725 = vmul.f32 %v1724, 0.5
    %v1726 = vadd.f32 %v1725, 0.5
    %v1727 = vmul.f32 %v1726, %v1649
    %v1729 = vsel %vm1323, %v1727, 0
    %1731 = vmatprep.subr.mxu0 0.0
    %1732 = vmatpush1.msra.mxu0 %v1318
    %1733 = vmatprep.subr.mxu0 0.0
    %1734 = vmatpush1.msra.mxu0 %v1319
    %1735 = vmatprep.subr.mxu0 0.0
    %1736 = vmatpush1.msra.mxu0 %v1320
    %1737 = vmatprep.subr.mxu0 0.0
    %1738 = vmatpush1.msra.mxu0 %v1321
    %1739 = vmatprep.subr.mxu0 0.0
    %1740 = vmatpush1.msra.mxu0 0.0
    %1741 = vmatprep.subr.mxu0 0.0
    %1742 = vmatpush1.msra.mxu0 0.0
    %1743 = vmatprep.subr.mxu0 0.0
    %1744 = vmatpush1.msra.mxu0 0.0
    %1745 = vmatprep.subr.mxu0 0.0
    %1746 = vmatpush1.msra.mxu0 0.0
    %1747 = vmatprep.subr.mxu0 0.0
    %1748 = vmatpush1.msra.mxu0 0.0
    %1749 = vmatprep.subr.mxu0 0.0
    %1750 = vmatpush1.msra.mxu0 0.0
    %1751 = vmatprep.subr.mxu0 0.0
    %1752 = vmatpush1.msra.mxu0 0.0
    %1753 = vmatprep.subr.mxu0 0.0
    %1754 = vmatpush1.msra.mxu0 0.0
    %1755 = vmatprep.subr.mxu0 0.0
    %1756 = vmatpush1.msra.mxu0 0.0
    %1757 = vmatprep.subr.mxu0 0.0
    %1758 = vmatpush1.msra.mxu0 0.0
    %1759 = vmatprep.subr.mxu0 0.0
    %1760 = vmatpush1.msra.mxu0 0.0
    %1761 = vmatprep.subr.mxu0 0.0
    %1762 = vmatpush1.msra.mxu0 0.0
    %1763 = vmatprep.subr.mxu0 0.0
    %1764 = vmatpush1.msra.mxu0 0.0
    %1765 = vmatprep.subr.mxu0 0.0
    %1766 = vmatpush1.msra.mxu0 0.0
    %1767 = vmatprep.subr.mxu0 0.0
    %1768 = vmatpush1.msra.mxu0 0.0
    %1769 = vmatprep.subr.mxu0 0.0
    %1770 = vmatpush1.msra.mxu0 0.0
    %1771 = vmatprep.subr.mxu0 0.0
    %1772 = vmatpush1.msra.mxu0 0.0
    %1773 = vmatprep.subr.mxu0 0.0
    %1774 = vmatpush1.msra.mxu0 0.0
    %1775 = vmatprep.subr.mxu0 0.0
    %1776 = vmatpush1.msra.mxu0 0.0
    %1777 = vmatprep.subr.mxu0 0.0
    %1778 = vmatpush1.msra.mxu0 0.0
    %1779 = vmatprep.subr.mxu0 0.0
    %1780 = vmatpush1.msra.mxu0 0.0
    %1781 = vmatprep.subr.mxu0 0.0
    %1782 = vmatpush1.msra.mxu0 0.0
    %1783 = vmatprep.subr.mxu0 0.0
    %1784 = vmatpush1.msra.mxu0 0.0
    %1785 = vmatprep.subr.mxu0 0.0
    %1786 = vmatpush1.msra.mxu0 0.0
    %1787 = vmatprep.subr.mxu0 0.0
    %1788 = vmatpush1.msra.mxu0 0.0
    %1789 = vmatprep.subr.mxu0 0.0
    %1790 = vmatpush1.msra.mxu0 0.0
    %1791 = vmatprep.subr.mxu0 0.0
    %1792 = vmatpush1.msra.mxu0 0.0
    %1793 = vmatprep.subr.mxu0 0.0
    %1794 = vmatpush1.msra.mxu0 0.0
    %1795 = vmatprep.mubr.f32.mxu0 0.0
    %1796 = vmatmul.mubr.f32.gmra.mrb[0].mxu0 %v1729
    %v1797 = vpop.f32.mrb[0].mxu0
    %v1798 = vadd.f32 %v687, %v1797
    %v1799 = vpop.f32.mrb[0].mxu0
    %1800 = vdwg.mxu0
    %v1801 = vtanh.pop %v1798
    %v1802 = vsub.f32 %v1801, %v1649
    %1804 = vrot.lane.b32.xlu0 %v1802, 32
    %v1805 = vpop.permute.xlu0 %1804
    %v1807 = vmul.f32 %v1726, %v1805
    %1809 = vrot.lane.b32.xlu0 %v1807, 96
    %v1810 = vpop.permute.xlu0 %1809
    %v1812 = vadd.f32 %v1649, %v1810
    %v1814 = vsel %vm1323, %v1812, 0
    %1816 = vmatprep.subr.mxu0 0.0
    %1817 = vmatpush1.msra.mxu0 %v1314
    %1818 = vmatprep.subr.mxu0 0.0
    %1819 = vmatpush1.msra.mxu0 %v1315
    %1820 = vmatprep.subr.mxu0 0.0
    %1821 = vmatpush1.msra.mxu0 %v1316
    %1822 = vmatprep.subr.mxu0 0.0
    %1823 = vmatpush1.msra.mxu0 %v1317
    %1824 = vmatprep.subr.mxu0 0.0
    %1825 = vmatpush1.msra.mxu0 0.0
    %1826 = vmatprep.subr.mxu0 0.0
    %1827 = vmatpush1.msra.mxu0 0.0
    %1828 = vmatprep.subr.mxu0 0.0
    %1829 = vmatpush1.msra.mxu0 0.0
    %1830 = vmatprep.subr.mxu0 0.0
    %1831 = vmatpush1.msra.mxu0 0.0
    %1832 = vmatprep.subr.mxu0 0.0
    %1833 = vmatpush1.msra.mxu0 0.0
    %1834 = vmatprep.subr.mxu0 0.0
    %1835 = vmatpush1.msra.mxu0 0.0
    %1836 = vmatprep.subr.mxu0 0.0
    %1837 = vmatpush1.msra.mxu0 0.0
    %1838 = vmatprep.subr.mxu0 0.0
    %1839 = vmatpush1.msra.mxu0 0.0
    %1840 = vmatprep.subr.mxu0 0.0
    %1841 = vmatpush1.msra.mxu0 0.0
    %1842 = vmatprep.subr.mxu0 0.0
    %1843 = vmatpush1.msra.mxu0 0.0
    %1844 = vmatprep.subr.mxu0 0.0
    %1845 = vmatpush1.msra.mxu0 0.0
    %1846 = vmatprep.subr.mxu0 0.0
    %1847 = vmatpush1.msra.mxu0 0.0
    %1848 = vmatprep.subr.mxu0 0.0
    %1849 = vmatpush1.msra.mxu0 0.0
    %1850 = vmatprep.subr.mxu0 0.0
    %1851 = vmatpush1.msra.mxu0 0.0
    %1852 = vmatprep.subr.mxu0 0.0
    %1853 = vmatpush1.msra.mxu0 0.0
    %1854 = vmatprep.subr.mxu0 0.0
    %1855 = vmatpush1.msra.mxu0 0.0
    %1856 = vmatprep.subr.mxu0 0.0
    %1857 = vmatpush1.msra.mxu0 0.0
    %1858 = vmatprep.subr.mxu0 0.0
    %1859 = vmatpush1.msra.mxu0 0.0
    %1860 = vmatprep.subr.mxu0 0.0
    %1861 = vmatpush1.msra.mxu0 0.0
    %1862 = vmatprep.subr.mxu0 0.0
    %1863 = vmatpush1.msra.mxu0 0.0
    %1864 = vmatprep.subr.mxu0 0.0
    %1865 = vmatpush1.msra.mxu0 0.0
    %1866 = vmatprep.subr.mxu0 0.0
    %1867 = vmatpush1.msra.mxu0 0.0
    %1868 = vmatprep.subr.mxu0 0.0
    %1869 = vmatpush1.msra.mxu0 0.0
    %1870 = vmatprep.subr.mxu0 0.0
    %1871 = vmatpush1.msra.mxu0 0.0
    %1872 = vmatprep.subr.mxu0 0.0
    %1873 = vmatpush1.msra.mxu0 0.0
    %1874 = vmatprep.subr.mxu0 0.0
    %1875 = vmatpush1.msra.mxu0 0.0
    %1876 = vmatprep.subr.mxu0 0.0
    %1877 = vmatpush1.msra.mxu0 0.0
    %1878 = vmatprep.subr.mxu0 0.0
    %1879 = vmatpush1.msra.mxu0 0.0
    %1880 = vmatprep.mubr.f32.mxu0 0.0
    %1881 = vmatmul.mubr.f32.gmra.mrb[0].mxu0 %v1814
    %v1882 = vpop.f32.mrb[0].mxu0
    %v1883 = vadd.f32 %v773, %v1882
    %v1884 = vpop.f32.mrb[0].mxu0
    %1885 = vdwg.mxu0
    %v1886 = vmul.f32 %v1883, 0.5
    %v1887 = vtanh.pop %v1886
    %v1888 = vmul.f32 %v1887, 0.5
    %v1889 = vadd.f32 %v1888, 0.5
    %v1890 = vmul.f32 %v1889, %v1812
    %v1892 = vsel %vm1323, %v1890, 0
    %1894 = vmatprep.subr.mxu0 0.0
    %1895 = vmatpush1.msra.mxu0 %v1318
    %1896 = vmatprep.subr.mxu0 0.0
    %1897 = vmatpush1.msra.mxu0 %v1319
    %1898 = vmatprep.subr.mxu0 0.0
    %1899 = vmatpush1.msra.mxu0 %v1320
    %1900 = vmatprep.subr.mxu0 0.0
    %1901 = vmatpush1.msra.mxu0 %v1321
    %1902 = vmatprep.subr.mxu0 0.0
    %1903 = vmatpush1.msra.mxu0 0.0
    %1904 = vmatprep.subr.mxu0 0.0
    %1905 = vmatpush1.msra.mxu0 0.0
    %1906 = vmatprep.subr.mxu0 0.0
    %1907 = vmatpush1.msra.mxu0 0.0
    %1908 = vmatprep.subr.mxu0 0.0
    %1909 = vmatpush1.msra.mxu0 0.0
    %1910 = vmatprep.subr.mxu0 0.0
    %1911 = vmatpush1.msra.mxu0 0.0
    %1912 = vmatprep.subr.mxu0 0.0
    %1913 = vmatpush1.msra.mxu0 0.0
    %1914 = vmatprep.subr.mxu0 0.0
    %1915 = vmatpush1.msra.mxu0 0.0
    %1916 = vmatprep.subr.mxu0 0.0
    %1917 = vmatpush1.msra.mxu0 0.0
    %1918 = vmatprep.subr.mxu0 0.0
    %1919 = vmatpush1.msra.mxu0 0.0
    %1920 = vmatprep.subr.mxu0 0.0
    %1921 = vmatpush1.msra.mxu0 0.0
    %1922 = vmatprep.subr.mxu0 0.0
    %1923 = vmatpush1.msra.mxu0 0.0
    %1924 = vmatprep.subr.mxu0 0.0
    %1925 = vmatpush1.msra.mxu0 0.0
    %1926 = vmatprep.subr.mxu0 0.0
    %1927 = vmatpush1.msra.mxu0 0.0
    %1928 = vmatprep.subr.mxu0 0.0
    %1929 = vmatpush1.msra.mxu0 0.0
    %1930 = vmatprep.subr.mxu0 0.0
    %1931 = vmatpush1.msra.mxu0 0.0
    %1932 = vmatprep.subr.mxu0 0.0
    %1933 = vmatpush1.msra.mxu0 0.0
    %1934 = vmatprep.subr.mxu0 0.0
    %1935 = vmatpush1.msra.mxu0 0.0
    %1936 = vmatprep.subr.mxu0 0.0
    %1937 = vmatpush1.msra.mxu0 0.0
    %1938 = vmatprep.subr.mxu0 0.0
    %1939 = vmatpush1.msra.mxu0 0.0
    %1940 = vmatprep.subr.mxu0 0.0
    %1941 = vmatpush1.msra.mxu0 0.0
    %1942 = vmatprep.subr.mxu0 0.0
    %1943 = vmatpush1.msra.mxu0 0.0
    %1944 = vmatprep.subr.mxu0 0.0
    %1945 = vmatpush1.msra.mxu0 0.0
    %1946 = vmatprep.subr.mxu0 0.0
    %1947 = vmatpush1.msra.mxu0 0.0
    %1948 = vmatprep.subr.mxu0 0.0
    %1949 = vmatpush1.msra.mxu0 0.0
    %1950 = vmatprep.subr.mxu0 0.0
    %1951 = vmatpush1.msra.mxu0 0.0
    %1952 = vmatprep.subr.mxu0 0.0
    %1953 = vmatpush1.msra.mxu0 0.0
    %1954 = vmatprep.subr.mxu0 0.0
    %1955 = vmatpush1.msra.mxu0 0.0
    %1956 = vmatprep.subr.mxu0 0.0
    %1957 = vmatpush1.msra.mxu0 0.0
    %1958 = vmatprep.mubr.f32.mxu0 0.0
    %1959 = vmatmul.mubr.f32.gmra.mrb[0].mxu0 %v1892
    %v1960 = vpop.f32.mrb[0].mxu0
    %v1961 = vadd.f32 %v843, %v1960
    %v1962 = vpop.f32.mrb[0].mxu0
    %1963 = vdwg.mxu0
    %v1964 = vtanh.pop %v1961
    %v1965 = vsub.f32 %v1964, %v1812
    %1967 = vrot.lane.b32.xlu0 %v1965, 32
    %v1968 = vpop.permute.xlu0 %1967
    %v1970 = vmul.f32 %v1889, %v1968
    %1972 = vrot.lane.b32.xlu0 %v1970, 96
    %v1973 = vpop.permute.xlu0 %1972
    %v1975 = vadd.f32 %v1812, %v1973
    %v1977 = vsel %vm1323, %v1975, 0
    %1979 = vmatprep.subr.mxu0 0.0
    %1980 = vmatpush1.msra.mxu0 %v1314
    %1981 = vmatprep.subr.mxu0 0.0
    %1982 = vmatpush1.msra.mxu0 %v1315
    %1983 = vmatprep.subr.mxu0 0.0
    %1984 = vmatpush1.msra.mxu0 %v1316
    %1985 = vmatprep.subr.mxu0 0.0
    %1986 = vmatpush1.msra.mxu0 %v1317
    %1987 = vmatprep.subr.mxu0 0.0
    %1988 = vmatpush1.msra.mxu0 0.0
    %1989 = vmatprep.subr.mxu0 0.0
    %1990 = vmatpush1.msra.mxu0 0.0
    %1991 = vmatprep.subr.mxu0 0.0
    %1992 = vmatpush1.msra.mxu0 0.0
    %1993 = vmatprep.subr.mxu0 0.0
    %1994 = vmatpush1.msra.mxu0 0.0
    %1995 = vmatprep.subr.mxu0 0.0
    %1996 = vmatpush1.msra.mxu0 0.0
    %1997 = vmatprep.subr.mxu0 0.0
    %1998 = vmatpush1.msra.mxu0 0.0
    %1999 = vmatprep.subr.mxu0 0.0
    %2000 = vmatpush1.msra.mxu0 0.0
    %2001 = vmatprep.subr.mxu0 0.0
    %2002 = vmatpush1.msra.mxu0 0.0
    %2003 = vmatprep.subr.mxu0 0.0
    %2004 = vmatpush1.msra.mxu0 0.0
    %2005 = vmatprep.subr.mxu0 0.0
    %2006 = vmatpush1.msra.mxu0 0.0
    %2007 = vmatprep.subr.mxu0 0.0
    %2008 = vmatpush1.msra.mxu0 0.0
    %2009 = vmatprep.subr.mxu0 0.0
    %2010 = vmatpush1.msra.mxu0 0.0
    %2011 = vmatprep.subr.mxu0 0.0
    %2012 = vmatpush1.msra.mxu0 0.0
    %2013 = vmatprep.subr.mxu0 0.0
    %2014 = vmatpush1.msra.mxu0 0.0
    %2015 = vmatprep.subr.mxu0 0.0
    %2016 = vmatpush1.msra.mxu0 0.0
    %2017 = vmatprep.subr.mxu0 0.0
    %2018 = vmatpush1.msra.mxu0 0.0
    %2019 = vmatprep.subr.mxu0 0.0
    %2020 = vmatpush1.msra.mxu0 0.0
    %2021 = vmatprep.subr.mxu0 0.0
    %2022 = vmatpush1.msra.mxu0 0.0
    %2023 = vmatprep.subr.mxu0 0.0
    %2024 = vmatpush1.msra.mxu0 0.0
    %2025 = vmatprep.subr.mxu0 0.0
    %2026 = vmatpush1.msra.mxu0 0.0
    %2027 = vmatprep.subr.mxu0 0.0
    %2028 = vmatpush1.msra.mxu0 0.0
    %2029 = vmatprep.subr.mxu0 0.0
    %2030 = vmatpush1.msra.mxu0 0.0
    %2031 = vmatprep.subr.mxu0 0.0
    %2032 = vmatpush1.msra.mxu0 0.0
    %2033 = vmatprep.subr.mxu0 0.0
    %2034 = vmatpush1.msra.mxu0 0.0
    %2035 = vmatprep.subr.mxu0 0.0
    %2036 = vmatpush1.msra.mxu0 0.0
    %2037 = vmatprep.subr.mxu0 0.0
    %2038 = vmatpush1.msra.mxu0 0.0
    %2039 = vmatprep.subr.mxu0 0.0
    %2040 = vmatpush1.msra.mxu0 0.0
    %2041 = vmatprep.subr.mxu0 0.0
    %2042 = vmatpush1.msra.mxu0 0.0
    %2043 = vmatprep.mubr.f32.mxu0 0.0
    %2044 = vmatmul.mubr.f32.gmra.mrb[0].mxu0 %v1977
    %v2045 = vpop.f32.mrb[0].mxu0
    %v2046 = vadd.f32 %v929, %v2045
    %v2047 = vpop.f32.mrb[0].mxu0
    %2048 = vdwg.mxu0
    %v2049 = vmul.f32 %v2046, 0.5
    %v2050 = vtanh.pop %v2049
    %v2051 = vmul.f32 %v2050, 0.5
    %v2052 = vadd.f32 %v2051, 0.5
    %v2053 = vmul.f32 %v2052, %v1975
    %v2055 = vsel %vm1323, %v2053, 0
    %2057 = vmatprep.subr.mxu0 0.0
    %2058 = vmatpush1.msra.mxu0 %v1318
    %2059 = vmatprep.subr.mxu0 0.0
    %2060 = vmatpush1.msra.mxu0 %v1319
    %2061 = vmatprep.subr.mxu0 0.0
    %2062 = vmatpush1.msra.mxu0 %v1320
    %2063 = vmatprep.subr.mxu0 0.0
    %2064 = vmatpush1.msra.mxu0 %v1321
    %2065 = vmatprep.subr.mxu0 0.0
    %2066 = vmatpush1.msra.mxu0 0.0
    %2067 = vmatprep.subr.mxu0 0.0
    %2068 = vmatpush1.msra.mxu0 0.0
    %2069 = vmatprep.subr.mxu0 0.0
    %2070 = vmatpush1.msra.mxu0 0.0
    %2071 = vmatprep.subr.mxu0 0.0
    %2072 = vmatpush1.msra.mxu0 0.0
    %2073 = vmatprep.subr.mxu0 0.0
    %2074 = vmatpush1.msra.mxu0 0.0
    %2075 = vmatprep.subr.mxu0 0.0
    %2076 = vmatpush1.msra.mxu0 0.0
    %2077 = vmatprep.subr.mxu0 0.0
    %2078 = vmatpush1.msra.mxu0 0.0
    %2079 = vmatprep.subr.mxu0 0.0
    %2080 = vmatpush1.msra.mxu0 0.0
    %2081 = vmatprep.subr.mxu0 0.0
    %2082 = vmatpush1.msra.mxu0 0.0
    %2083 = vmatprep.subr.mxu0 0.0
    %2084 = vmatpush1.msra.mxu0 0.0
    %2085 = vmatprep.subr.mxu0 0.0
    %2086 = vmatpush1.msra.mxu0 0.0
    %2087 = vmatprep.subr.mxu0 0.0
    %2088 = vmatpush1.msra.mxu0 0.0
    %2089 = vmatprep.subr.mxu0 0.0
    %2090 = vmatpush1.msra.mxu0 0.0
    %2091 = vmatprep.subr.mxu0 0.0
    %2092 = vmatpush1.msra.mxu0 0.0
    %2093 = vmatprep.subr.mxu0 0.0
    %2094 = vmatpush1.msra.mxu0 0.0
    %2095 = vmatprep.subr.mxu0 0.0
    %2096 = vmatpush1.msra.mxu0 0.0
    %2097 = vmatprep.subr.mxu0 0.0
    %2098 = vmatpush1.msra.mxu0 0.0
    %2099 = vmatprep.subr.mxu0 0.0
    %2100 = vmatpush1.msra.mxu0 0.0
    %2101 = vmatprep.subr.mxu0 0.0
    %2102 = vmatpush1.msra.mxu0 0.0
    %2103 = vmatprep.subr.mxu0 0.0
    %2104 = vmatpush1.msra.mxu0 0.0
    %2105 = vmatprep.subr.mxu0 0.0
    %2106 = vmatpush1.msra.mxu0 0.0
    %2107 = vmatprep.subr.mxu0 0.0
    %2108 = vmatpush1.msra.mxu0 0.0
    %2109 = vmatprep.subr.mxu0 0.0
    %2110 = vmatpush1.msra.mxu0 0.0
    %2111 = vmatprep.subr.mxu0 0.0
    %2112 = vmatpush1.msra.mxu0 0.0
    %2113 = vmatprep.subr.mxu0 0.0
    %2114 = vmatpush1.msra.mxu0 0.0
    %2115 = vmatprep.subr.mxu0 0.0
    %2116 = vmatpush1.msra.mxu0 0.0
    %2117 = vmatprep.subr.mxu0 0.0
    %2118 = vmatpush1.msra.mxu0 0.0
    %2119 = vmatprep.subr.mxu0 0.0
    %2120 = vmatpush1.msra.mxu0 0.0
    %2121 = vmatprep.mubr.f32.mxu0 0.0
    %2122 = vmatmul.mubr.f32.gmra.mrb[0].mxu0 %v2055
    %v2123 = vpop.f32.mrb[0].mxu0
    %v2124 = vadd.f32 %v999, %v2123
    %v2125 = vpop.f32.mrb[0].mxu0
    %2126 = vdwg.mxu0
    %v2127 = vtanh.pop %v2124
    %v2128 = vsub.f32 %v2127, %v1975
    %2130 = vrot.lane.b32.xlu0 %v2128, 32
    %v2131 = vpop.permute.xlu0 %2130
    %v2133 = vmul.f32 %v2052, %v2131
    %2135 = vrot.lane.b32.xlu0 %v2133, 96
    %v2136 = vpop.permute.xlu0 %2135
    %v2138 = vadd.f32 %v1975, %v2136
    %v2140 = vsel %vm1323, %v2138, 0
    %2142 = vmatprep.subr.mxu0 0.0
    %2143 = vmatpush1.msra.mxu0 %v1314
    %2144 = vmatprep.subr.mxu0 0.0
    %2145 = vmatpush1.msra.mxu0 %v1315
    %2146 = vmatprep.subr.mxu0 0.0
    %2147 = vmatpush1.msra.mxu0 %v1316
    %2148 = vmatprep.subr.mxu0 0.0
    %2149 = vmatpush1.msra.mxu0 %v1317
    %2150 = vmatprep.subr.mxu0 0.0
    %2151 = vmatpush1.msra.mxu0 0.0
    %2152 = vmatprep.subr.mxu0 0.0
    %2153 = vmatpush1.msra.mxu0 0.0
    %2154 = vmatprep.subr.mxu0 0.0
    %2155 = vmatpush1.msra.mxu0 0.0
    %2156 = vmatprep.subr.mxu0 0.0
    %2157 = vmatpush1.msra.mxu0 0.0
    %2158 = vmatprep.subr.mxu0 0.0
    %2159 = vmatpush1.msra.mxu0 0.0
    %2160 = vmatprep.subr.mxu0 0.0
    %2161 = vmatpush1.msra.mxu0 0.0
    %2162 = vmatprep.subr.mxu0 0.0
    %2163 = vmatpush1.msra.mxu0 0.0
    %2164 = vmatprep.subr.mxu0 0.0
    %2165 = vmatpush1.msra.mxu0 0.0
    %2166 = vmatprep.subr.mxu0 0.0
    %2167 = vmatpush1.msra.mxu0 0.0
    %2168 = vmatprep.subr.mxu0 0.0
    %2169 = vmatpush1.msra.mxu0 0.0
    %2170 = vmatprep.subr.mxu0 0.0
    %2171 = vmatpush1.msra.mxu0 0.0
    %2172 = vmatprep.subr.mxu0 0.0
    %2173 = vmatpush1.msra.mxu0 0.0
    %2174 = vmatprep.subr.mxu0 0.0
    %2175 = vmatpush1.msra.mxu0 0.0
    %2176 = vmatprep.subr.mxu0 0.0
    %2177 = vmatpush1.msra.mxu0 0.0
    %2178 = vmatprep.subr.mxu0 0.0
    %2179 = vmatpush1.msra.mxu0 0.0
    %2180 = vmatprep.subr.mxu0 0.0
    %2181 = vmatpush1.msra.mxu0 0.0
    %2182 = vmatprep.subr.mxu0 0.0
    %2183 = vmatpush1.msra.mxu0 0.0
    %2184 = vmatprep.subr.mxu0 0.0
    %2185 = vmatpush1.msra.mxu0 0.0
    %2186 = vmatprep.subr.mxu0 0.0
    %2187 = vmatpush1.msra.mxu0 0.0
    %2188 = vmatprep.subr.mxu0 0.0
    %2189 = vmatpush1.msra.mxu0 0.0
    %2190 = vmatprep.subr.mxu0 0.0
    %2191 = vmatpush1.msra.mxu0 0.0
    %2192 = vmatprep.subr.mxu0 0.0
    %2193 = vmatpush1.msra.mxu0 0.0
    %2194 = vmatprep.subr.mxu0 0.0
    %2195 = vmatpush1.msra.mxu0 0.0
    %2196 = vmatprep.subr.mxu0 0.0
    %2197 = vmatpush1.msra.mxu0 0.0
    %2198 = vmatprep.subr.mxu0 0.0
    %2199 = vmatpush1.msra.mxu0 0.0
    %2200 = vmatprep.subr.mxu0 0.0
    %2201 = vmatpush1.msra.mxu0 0.0
    %2202 = vmatprep.subr.mxu0 0.0
    %2203 = vmatpush1.msra.mxu0 0.0
    %2204 = vmatprep.subr.mxu0 0.0
    %2205 = vmatpush1.msra.mxu0 0.0
    %2206 = vmatprep.mubr.f32.mxu0 0.0
    %2207 = vmatmul.mubr.f32.gmra.mrb[0].mxu0 %v2140
    %v2208 = vpop.f32.mrb[0].mxu0
    %v2209 = vadd.f32 %v1085, %v2208
    %v2210 = vpop.f32.mrb[0].mxu0
    %2211 = vdwg.mxu0
    %v2212 = vmul.f32 %v2209, 0.5
    %v2213 = vtanh.pop %v2212
    %v2214 = vmul.f32 %v2213, 0.5
    %v2215 = vadd.f32 %v2214, 0.5
    %v2216 = vmul.f32 %v2215, %v2138
    %v2218 = vsel %vm1323, %v2216, 0
    %2220 = vmatprep.subr.mxu0 0.0
    %2221 = vmatpush1.msra.mxu0 %v1318
    %2222 = vmatprep.subr.mxu0 0.0
    %2223 = vmatpush1.msra.mxu0 %v1319
    %2224 = vmatprep.subr.mxu0 0.0
    %2225 = vmatpush1.msra.mxu0 %v1320
    %2226 = vmatprep.subr.mxu0 0.0
    %2227 = vmatpush1.msra.mxu0 %v1321
    %2228 = vmatprep.subr.mxu0 0.0
    %2229 = vmatpush1.msra.mxu0 0.0
    %2230 = vmatprep.subr.mxu0 0.0
    %2231 = vmatpush1.msra.mxu0 0.0
    %2232 = vmatprep.subr.mxu0 0.0
    %2233 = vmatpush1.msra.mxu0 0.0
    %2234 = vmatprep.subr.mxu0 0.0
    %2235 = vmatpush1.msra.mxu0 0.0
    %2236 = vmatprep.subr.mxu0 0.0
    %2237 = vmatpush1.msra.mxu0 0.0
    %2238 = vmatprep.subr.mxu0 0.0
    %2239 = vmatpush1.msra.mxu0 0.0
    %2240 = vmatprep.subr.mxu0 0.0
    %2241 = vmatpush1.msra.mxu0 0.0
    %2242 = vmatprep.subr.mxu0 0.0
    %2243 = vmatpush1.msra.mxu0 0.0
    %2244 = vmatprep.subr.mxu0 0.0
    %2245 = vmatpush1.msra.mxu0 0.0
    %2246 = vmatprep.subr.mxu0 0.0
    %2247 = vmatpush1.msra.mxu0 0.0
    %2248 = vmatprep.subr.mxu0 0.0
    %2249 = vmatpush1.msra.mxu0 0.0
    %2250 = vmatprep.subr.mxu0 0.0
    %2251 = vmatpush1.msra.mxu0 0.0
    %2252 = vmatprep.subr.mxu0 0.0
    %2253 = vmatpush1.msra.mxu0 0.0
    %2254 = vmatprep.subr.mxu0 0.0
    %2255 = vmatpush1.msra.mxu0 0.0
    %2256 = vmatprep.subr.mxu0 0.0
    %2257 = vmatpush1.msra.mxu0 0.0
    %2258 = vmatprep.subr.mxu0 0.0
    %2259 = vmatpush1.msra.mxu0 0.0
    %2260 = vmatprep.subr.mxu0 0.0
    %2261 = vmatpush1.msra.mxu0 0.0
    %2262 = vmatprep.subr.mxu0 0.0
    %2263 = vmatpush1.msra.mxu0 0.0
    %2264 = vmatprep.subr.mxu0 0.0
    %2265 = vmatpush1.msra.mxu0 0.0
    %2266 = vmatprep.subr.mxu0 0.0
    %2267 = vmatpush1.msra.mxu0 0.0
    %2268 = vmatprep.subr.mxu0 0.0
    %2269 = vmatpush1.msra.mxu0 0.0
    %2270 = vmatprep.subr.mxu0 0.0
    %2271 = vmatpush1.msra.mxu0 0.0
    %2272 = vmatprep.subr.mxu0 0.0
    %2273 = vmatpush1.msra.mxu0 0.0
    %2274 = vmatprep.subr.mxu0 0.0
    %2275 = vmatpush1.msra.mxu0 0.0
    %2276 = vmatprep.subr.mxu0 0.0
    %2277 = vmatpush1.msra.mxu0 0.0
    %2278 = vmatprep.subr.mxu0 0.0
    %2279 = vmatpush1.msra.mxu0 0.0
    %2280 = vmatprep.subr.mxu0 0.0
    %2281 = vmatpush1.msra.mxu0 0.0
    %2282 = vmatprep.subr.mxu0 0.0
    %2283 = vmatpush1.msra.mxu0 0.0
    %2284 = vmatprep.mubr.f32.mxu0 0.0
    %2285 = vmatmul.mubr.f32.gmra.mrb[0].mxu0 %v2218
    %v2286 = vpop.f32.mrb[0].mxu0
    %v2287 = vadd.f32 %v1155, %v2286
    %v2288 = vpop.f32.mrb[0].mxu0
    %2289 = vdwg.mxu0
    %v2290 = vtanh.pop %v2287
    %v2291 = vsub.f32 %v2290, %v2138
    %2293 = vrot.lane.b32.xlu0 %v2291, 32
    %v2294 = vpop.permute.xlu0 %2293
    %v2296 = vmul.f32 %v2215, %v2294
    %2298 = vrot.lane.b32.xlu0 %v2296, 96
    %v2299 = vpop.permute.xlu0 %2298
    %v2301 = vadd.f32 %v2138, %v2299
    %v2303 = vsel %vm1323, %v2301, 0
    %2305 = vmatprep.subr.mxu0 0.0
    %2306 = vmatpush1.msra.mxu0 %v1314
    %2307 = vmatprep.subr.mxu0 0.0
    %2308 = vmatpush1.msra.mxu0 %v1315
    %2309 = vmatprep.subr.mxu0 0.0
    %2310 = vmatpush1.msra.mxu0 %v1316
    %2311 = vmatprep.subr.mxu0 0.0
    %2312 = vmatpush1.msra.mxu0 %v1317
    %2313 = vmatprep.subr.mxu0 0.0
    %2314 = vmatpush1.msra.mxu0 0.0
    %2315 = vmatprep.subr.mxu0 0.0
    %2316 = vmatpush1.msra.mxu0 0.0
    %2317 = vmatprep.subr.mxu0 0.0
    %2318 = vmatpush1.msra.mxu0 0.0
    %2319 = vmatprep.subr.mxu0 0.0
    %2320 = vmatpush1.msra.mxu0 0.0
    %2321 = vmatprep.subr.mxu0 0.0
    %2322 = vmatpush1.msra.mxu0 0.0
    %2323 = vmatprep.subr.mxu0 0.0
    %2324 = vmatpush1.msra.mxu0 0.0
    %2325 = vmatprep.subr.mxu0 0.0
    %2326 = vmatpush1.msra.mxu0 0.0
    %2327 = vmatprep.subr.mxu0 0.0
    %2328 = vmatpush1.msra.mxu0 0.0
    %2329 = vmatprep.subr.mxu0 0.0
    %2330 = vmatpush1.msra.mxu0 0.0
    %2331 = vmatprep.subr.mxu0 0.0
    %2332 = vmatpush1.msra.mxu0 0.0
    %2333 = vmatprep.subr.mxu0 0.0
    %2334 = vmatpush1.msra.mxu0 0.0
    %2335 = vmatprep.subr.mxu0 0.0
    %2336 = vmatpush1.msra.mxu0 0.0
    %2337 = vmatprep.subr.mxu0 0.0
    %2338 = vmatpush1.msra.mxu0 0.0
    %2339 = vmatprep.subr.mxu0 0.0
    %2340 = vmatpush1.msra.mxu0 0.0
    %2341 = vmatprep.subr.mxu0 0.0
    %2342 = vmatpush1.msra.mxu0 0.0
    %2343 = vmatprep.subr.mxu0 0.0
    %2344 = vmatpush1.msra.mxu0 0.0
    %2345 = vmatprep.subr.mxu0 0.0
    %2346 = vmatpush1.msra.mxu0 0.0
    %2347 = vmatprep.subr.mxu0 0.0
    %2348 = vmatpush1.msra.mxu0 0.0
    %2349 = vmatprep.subr.mxu0 0.0
    %2350 = vmatpush1.msra.mxu0 0.0
    %2351 = vmatprep.subr.mxu0 0.0
    %2352 = vmatpush1.msra.mxu0 0.0
    %2353 = vmatprep.subr.mxu0 0.0
    %2354 = vmatpush1.msra.mxu0 0.0
    %2355 = vmatprep.subr.mxu0 0.0
    %2356 = vmatpush1.msra.mxu0 0.0
    %2357 = vmatprep.subr.mxu0 0.0
    %2358 = vmatpush1.msra.mxu0 0.0
    %2359 = vmatprep.subr.mxu0 0.0
    %2360 = vmatpush1.msra.mxu0 0.0
    %2361 = vmatprep.subr.mxu0 0.0
    %2362 = vmatpush1.msra.mxu0 0.0
    %2363 = vmatprep.subr.mxu0 0.0
    %2364 = vmatpush1.msra.mxu0 0.0
    %2365 = vmatprep.subr.mxu0 0.0
    %2366 = vmatpush1.msra.mxu0 0.0
    %2367 = vmatprep.subr.mxu0 0.0
    %2368 = vmatpush1.msra.mxu0 0.0
    %2369 = vmatprep.mubr.f32.mxu0 0.0
    %2370 = vmatmul.mubr.f32.gmra.mrb[0].mxu0 %v2303
    %v2371 = vpop.f32.mrb[0].mxu0
    %v2372 = vadd.f32 %v1241, %v2371
    %v2373 = vpop.f32.mrb[0].mxu0
    %2374 = vdwg.mxu0
    %v2375 = vmul.f32 %v2372, 0.5
    %v2376 = vtanh.pop %v2375
    %v2377 = vmul.f32 %v2376, 0.5
    %v2378 = vadd.f32 %v2377, 0.5
    %v2379 = vmul.f32 %v2378, %v2301
    %v2381 = vsel %vm1323, %v2379, 0
    %2383 = vmatprep.subr.mxu0 0.0
    %2384 = vmatpush1.msra.mxu0 %v1318
    %2385 = vmatprep.subr.mxu0 0.0
    %2386 = vmatpush1.msra.mxu0 %v1319
    %2387 = vmatprep.subr.mxu0 0.0
    %2388 = vmatpush1.msra.mxu0 %v1320
    %2389 = vmatprep.subr.mxu0 0.0
    %2390 = vmatpush1.msra.mxu0 %v1321
    %2391 = vmatprep.subr.mxu0 0.0
    %2392 = vmatpush1.msra.mxu0 0.0
    %2393 = vmatprep.subr.mxu0 0.0
    %2394 = vmatpush1.msra.mxu0 0.0
    %2395 = vmatprep.subr.mxu0 0.0
    %2396 = vmatpush1.msra.mxu0 0.0
    %2397 = vmatprep.subr.mxu0 0.0
    %2398 = vmatpush1.msra.mxu0 0.0
    %2399 = vmatprep.subr.mxu0 0.0
    %2400 = vmatpush1.msra.mxu0 0.0
    %2401 = vmatprep.subr.mxu0 0.0
    %2402 = vmatpush1.msra.mxu0 0.0
    %2403 = vmatprep.subr.mxu0 0.0
    %2404 = vmatpush1.msra.mxu0 0.0
    %2405 = vmatprep.subr.mxu0 0.0
    %2406 = vmatpush1.msra.mxu0 0.0
    %2407 = vmatprep.subr.mxu0 0.0
    %2408 = vmatpush1.msra.mxu0 0.0
    %2409 = vmatprep.subr.mxu0 0.0
    %2410 = vmatpush1.msra.mxu0 0.0
    %2411 = vmatprep.subr.mxu0 0.0
    %2412 = vmatpush1.msra.mxu0 0.0
    %2413 = vmatprep.subr.mxu0 0.0
    %2414 = vmatpush1.msra.mxu0 0.0
    %2415 = vmatprep.subr.mxu0 0.0
    %2416 = vmatpush1.msra.mxu0 0.0
    %2417 = vmatprep.subr.mxu0 0.0
    %2418 = vmatpush1.msra.mxu0 0.0
    %2419 = vmatprep.subr.mxu0 0.0
    %2420 = vmatpush1.msra.mxu0 0.0
    %2421 = vmatprep.subr.mxu0 0.0
    %2422 = vmatpush1.msra.mxu0 0.0
    %2423 = vmatprep.subr.mxu0 0.0
    %2424 = vmatpush1.msra.mxu0 0.0
    %2425 = vmatprep.subr.mxu0 0.0
    %2426 = vmatpush1.msra.mxu0 0.0
    %2427 = vmatprep.subr.mxu0 0.0
    %2428 = vmatpush1.msra.mxu0 0.0
    %2429 = vmatprep.subr.mxu0 0.0
    %2430 = vmatpush1.msra.mxu0 0.0
    %2431 = vmatprep.subr.mxu0 0.0
    %2432 = vmatpush1.msra.mxu0 0.0
    %2433 = vmatprep.subr.mxu0 0.0
    %2434 = vmatpush1.msra.mxu0 0.0
    %2435 = vmatprep.subr.mxu0 0.0
    %2436 = vmatpush1.msra.mxu0 0.0
    %2437 = vmatprep.subr.mxu0 0.0
    %2438 = vmatpush1.msra.mxu0 0.0
    %2439 = vmatprep.subr.mxu0 0.0
    %2440 = vmatpush1.msra.mxu0 0.0
    %2441 = vmatprep.subr.mxu0 0.0
    %2442 = vmatpush1.msra.mxu0 0.0
    %2443 = vmatprep.subr.mxu0 0.0
    %2444 = vmatpush1.msra.mxu0 0.0
    %2445 = vmatprep.subr.mxu0 0.0
    %2446 = vmatpush1.msra.mxu0 0.0
    %2447 = vmatprep.mubr.f32.mxu0 0.0
    %2448 = vmatmul.mubr.f32.gmra.mrb[0].mxu0 %v2381
    %v2449 = vpop.f32.mrb[0].mxu0
    %v2450 = vadd.f32 %v1311, %v2449
    %v2451 = vpop.f32.mrb[0].mxu0
    %2452 = vdwg.mxu0
    %v2453 = vtanh.pop %v2450
    %v2454 = vsub.f32 %v2453, %v2301
    %2456 = vrot.lane.b32.xlu0 %v2454, 32
    %v2457 = vpop.permute.xlu0 %2456
    %v2459 = vmul.f32 %v2378, %v2457
    %2461 = vrot.lane.b32.xlu0 %v2459, 96
    %v2462 = vpop.permute.xlu0 %2461
    %v2464 = vadd.f32 %v2301, %v2462
    %2465 = vrot.lane.b32.xlu0 %v1486, 32
    %v2466 = vpop.permute.xlu0 %2465
    %2468 = vrot.lane.b32.xlu0 %v1649, 64
    %v2469 = vpop.permute.xlu0 %2468
    %2471 = vrot.lane.b32.xlu0 %v1812, 96
    %v2472 = vpop.permute.xlu0 %2471
    %2474 = vrot.lane.b32.xlu0 %v2138, 32
    %v2475 = vpop.permute.xlu0 %2474
    %2477 = vrot.lane.b32.xlu0 %v2301, 64
    %v2478 = vpop.permute.xlu0 %2477
    %2481 = vrot.lane.b32.xlu0 %v2464, 96
    %v2482 = vpop.permute.xlu0 %2481
    %v2484 = vsel %vm1323, %v1322, %v2466
    %vm2485 = vcmask 523264
    %v2486 = vsel %vm2485, %v2484, %v2469
    %vm2487 = vcmask 785408
    %v2488 = vsel %vm2487, %v2486, %v2472
    %v2489 = vsel %vm1323, %v1975, %v2475
    %v2490 = vsel %vm2485, %v2489, %v2478
    %v2491 = vsel %vm2487, %v2490, %v2482
    %v2494 = vcombine.low %v2488, %v2491
    %2496 = vst [vmem:[%s8] sm:$0xff] %v2494
    // Predicated region
    $region54: #{gru_topology_forward.1} parent=1 // pred_check
      _
    $region55: #{gru_topology_forward.1} parent=1 // pred_check_branch
      %2498 = sbr.rel (0) target = $region57
    $region56: #{gru_topology_forward.1} parent=1 // pred_region
      _
    $region57: #{gru_topology_forward.1} parent=1 // pred_fallthru
      _
    // Predicated region
    $region58: #{gru_topology_forward.1} parent=1 // pred_check
      _
    $region59: #{gru_topology_forward.1} parent=1 // pred_check_branch
      %2500 = sbr.rel (0) target = $region61
    $region60: #{gru_topology_forward.1} parent=1 // pred_region
      _
    $region61: #{gru_topology_forward.1} parent=1 // pred_fallthru
      _
    %2501 = vsyncpa [#allocation4], 1
    %2502 = vsyncpa [#allocation8], 1
    %2503 = vsyncpa [#allocation11], 1
    %2504 = vsyncpa [#allocation5], 1

</llo_original>
